<compile_context>
chip_gen: v5e
topology: v5e:2x2
jax: 0.10.0
libtpu: 0.0.40
codegen_flags: <defaults>
</compile_context>

<pallas_src>
import jax
import jax.numpy as jnp
from jax.experimental import pallas as pl
from jax.experimental.pallas import tpu as pltpu

IN_DIM, H1, H2, H3, OUT_DIM = 64 * 12, 256, 128, 64, 1


def chessnet_kernel(x_ref,
                    w1_ref, b1_ref,
                    w2_ref, b2_ref,
                    w3_ref, b3_ref,
                    w4t_ref, b4_ref,
                    o_ref):
    # fc1/fc2/fc3: bf16 operands on the MXU, f32 accumulation, f32 VPU ops.
    h = jnp.dot(x_ref[...], w1_ref[...], preferred_element_type=jnp.float32)
    h = jnp.maximum(h + b1_ref[...], 0.0)

    h = jnp.dot(h.astype(jnp.bfloat16), w2_ref[...],
                preferred_element_type=jnp.float32)
    h = jnp.maximum(h + b2_ref[...], 0.0)

    h = jnp.dot(h.astype(jnp.bfloat16), w3_ref[...],
                preferred_element_type=jnp.float32)
    h = jnp.maximum(h + b3_ref[...], 0.0)

    # fc4 as a lane-dense row: (1, 64) . (tile_b, 64)^T -> (1, tile_b)
    # (same contraction pattern as q @ K^T in decode attention).
    logits = jax.lax.dot_general(
        w4t_ref[...], h.astype(jnp.bfloat16),
        dimension_numbers=(((1,), (1,)), ((), ())),
        preferred_element_type=jnp.float32)
    o_ref[...] = jnp.tanh(logits + b4_ref[...])


def chessnet_forward(x, params, *, tile_b=128):
    """x: (B, 768) float32. Returns (B, 1) float32."""
    B = x.shape[0]
    w1, b1, w2, b2, w3, b3, w4, b4 = params

    # Clamp the batch tile for tiny inputs; keep it a multiple of 8 sublanes.
    tile_b = max(8, min(tile_b, ((B + 7) // 8) * 8))
    num_tiles = (B + tile_b - 1) // tile_b
    B_pad = num_tiles * tile_b

    # bf16 MXU operands; biases (and all post-matmul math) stay f32.
    x_bf = jnp.pad(x, ((0, B_pad - B), (0, 0))).astype(jnp.bfloat16)
    w1b = w1.astype(jnp.bfloat16)
    w2b = w2.astype(jnp.bfloat16)
    w3b = w3.astype(jnp.bfloat16)
    w4t = w4.T.astype(jnp.bfloat16)            # (1, 64)

    full = lambda shape: pl.BlockSpec(shape, lambda i: (0, 0))

    param_bytes = sum(int(a.size) * a.dtype.itemsize
                      for a in (w1b, b1, w2b, b2, w3b, b3, w4t, b4))
    flops = 2 * B_pad * (IN_DIM * H1 + H1 * H2 + H2 * H3 + H3 * OUT_DIM)
    cost = pl.CostEstimate(
        flops=flops,
        transcendentals=B_pad,                 # one tanh per batch row
        bytes_accessed=int(x_bf.size) * 2 + param_bytes + B_pad * 4)

    out = pl.pallas_call(
        chessnet_kernel,
        out_shape=jax.ShapeDtypeStruct((num_tiles, 1, tile_b), jnp.float32),
        grid_spec=pltpu.PrefetchScalarGridSpec(
            num_scalar_prefetch=0,
            grid=(num_tiles,),
            in_specs=[
                pl.BlockSpec((tile_b, IN_DIM), lambda i: (i, 0)),
                full((IN_DIM, H1)), full((1, H1)),
                full((H1, H2)),     full((1, H2)),
                full((H2, H3)),     full((1, H3)),
                full((1, H3)),      full((1, OUT_DIM)),
            ],
            out_specs=pl.BlockSpec((None, 1, tile_b), lambda i: (i, 0, 0)),
        ),
        compiler_params=pltpu.CompilerParams(
            dimension_semantics=("parallel",)),
        cost_estimate=cost,
    )(x_bf, w1b, b1, w2b, b2, w3b, b3, w4t, b4)

    # (num_tiles, 1, tile_b) row-major flatten is batch order; drop padding.
    return out.reshape(B_pad, 1)[:B]


def init_params(key):
    """Deterministic init mimicking PyTorch Linear default U[-1/sqrt(fan_in), +...]."""
    dims = [(IN_DIM, H1), (H1, H2), (H2, H3), (H3, OUT_DIM)]
    params = []
    for (fan_in, fan_out) in dims:
        key, kw, kb = jax.random.split(key, 3)
        bound = 1.0 / jnp.sqrt(float(fan_in))
        w = jax.random.uniform(kw, (fan_in, fan_out), jnp.float32, -bound, bound)
        b = jax.random.uniform(kb, (1, fan_out), jnp.float32, -bound, bound)
        params += [w, b]
    return params


def reference_forward(x, params):
    w1, b1, w2, b2, w3, b3, w4, b4 = params
    h = jnp.maximum(x @ w1 + b1, 0.0)
    h = jnp.maximum(h @ w2 + b2, 0.0)
    h = jnp.maximum(h @ w3 + b3, 0.0)
    return jnp.tanh(h @ w4 + b4)


if __name__ == "__main__":
    key = jax.random.PRNGKey(0)
    key, kx = jax.random.split(key)

    # B=256 with tile_b=128 -> 2 grid steps (both v7x TensorCores busy).
    B = 256
    x = jax.random.normal(kx, (B, IN_DIM), jnp.float32)
    params = init_params(key)

    out = jax.block_until_ready(chessnet_forward(x, params))

    ref = reference_forward(x, params)
    assert out.shape == (B, 1)
    # bf16 MXU operands with f32 accumulation vs the pure-f32 reference.
    assert jnp.allclose(out, ref, atol=3e-2, rtol=0.0)

    print("KERNEL_OK")
</pallas_src>

<mosaic_0001>
module attributes {stable_mosaic.version = 11 : i64} {
  func.func @chessnet_kernel(%arg0: i32, %arg1: memref<128x768xbf16, #tpu.memory_space<vmem>>, %arg2: memref<768x256xbf16, #tpu.memory_space<vmem>>, %arg3: memref<1x256xf32, #tpu.memory_space<vmem>>, %arg4: memref<256x128xbf16, #tpu.memory_space<vmem>>, %arg5: memref<1x128xf32, #tpu.memory_space<vmem>>, %arg6: memref<128x64xbf16, #tpu.memory_space<vmem>>, %arg7: memref<1x64xf32, #tpu.memory_space<vmem>>, %arg8: memref<1x64xbf16, #tpu.memory_space<vmem>>, %arg9: memref<1x1xf32, #tpu.memory_space<vmem>>, %arg10: memref<1x1x128xf32, #tpu.memory_space<vmem>>) attributes {dimension_semantics = [#tpu.dimension_semantics<parallel>], iteration_bounds = array<i64: 2>, scalar_prefetch = 0 : i64, scratch_operands = 0 : i64, tpu.core_type = #tpu.core_type<tc>, window_params = [{transform_indices = @transform_0, window_bounds = array<i64: 128, 768>}, {pipeline_mode = #tpu.pipeline_mode<synchronous>, transform_indices = @transform_1, window_bounds = array<i64: 768, 256>}, {pipeline_mode = #tpu.pipeline_mode<synchronous>, transform_indices = @transform_2, window_bounds = array<i64: 1, 256>}, {pipeline_mode = #tpu.pipeline_mode<synchronous>, transform_indices = @transform_3, window_bounds = array<i64: 256, 128>}, {pipeline_mode = #tpu.pipeline_mode<synchronous>, transform_indices = @transform_4, window_bounds = array<i64: 1, 128>}, {pipeline_mode = #tpu.pipeline_mode<synchronous>, transform_indices = @transform_5, window_bounds = array<i64: 128, 64>}, {pipeline_mode = #tpu.pipeline_mode<synchronous>, transform_indices = @transform_6, window_bounds = array<i64: 1, 64>}, {pipeline_mode = #tpu.pipeline_mode<synchronous>, transform_indices = @transform_7, window_bounds = array<i64: 1, 64>}, {pipeline_mode = #tpu.pipeline_mode<synchronous>, transform_indices = @transform_8, window_bounds = array<i64: 1, 1>}, {transform_indices = @transform_9, window_bounds = array<i64: 1, 1, 128>}]} {
    %c0 = arith.constant 0 : index
    %c0_0 = arith.constant 0 : index
    %0 = vector.load %arg1[%c0, %c0_0] : memref<128x768xbf16, #tpu.memory_space<vmem>>, vector<128x768xbf16>
    %c0_1 = arith.constant 0 : index
    %c0_2 = arith.constant 0 : index
    %1 = vector.load %arg2[%c0_1, %c0_2] : memref<768x256xbf16, #tpu.memory_space<vmem>>, vector<768x256xbf16>
    %cst = arith.constant dense<0.000000e+00> : vector<128x256xf32>
    %2 = tpu.matmul %0, %1, %cst {dimension_numbers = #tpu.dot_dimension_numbers<[1], [0], [0], [1], [0, 0, 1, 1], [], []>} : vector<128x768xbf16>, vector<768x256xbf16>, vector<128x256xf32> -> vector<128x256xf32>
    %c0_3 = arith.constant 0 : index
    %c0_4 = arith.constant 0 : index
    %3 = vector.load %arg3[%c0_3, %c0_4] : memref<1x256xf32, #tpu.memory_space<vmem>>, vector<1x256xf32>
    %4 = vector.broadcast %3 : vector<1x256xf32> to vector<128x256xf32>
    %5 = arith.addf %2, %4 : vector<128x256xf32>
    %cst_5 = arith.constant 0.000000e+00 : f32
    %6 = vector.broadcast %cst_5 : f32 to vector<128x256xf32>
    %7 = arith.maximumf %5, %6 : vector<128x256xf32>
    %8 = arith.truncf %7 : vector<128x256xf32> to vector<128x256xbf16>
    %c0_6 = arith.constant 0 : index
    %c0_7 = arith.constant 0 : index
    %9 = vector.load %arg4[%c0_6, %c0_7] : memref<256x128xbf16, #tpu.memory_space<vmem>>, vector<256x128xbf16>
    %cst_8 = arith.constant dense<0.000000e+00> : vector<128x128xf32>
    %10 = tpu.matmul %8, %9, %cst_8 {dimension_numbers = #tpu.dot_dimension_numbers<[1], [0], [0], [1], [0, 0, 1, 1], [], []>} : vector<128x256xbf16>, vector<256x128xbf16>, vector<128x128xf32> -> vector<128x128xf32>
    %c0_9 = arith.constant 0 : index
    %c0_10 = arith.constant 0 : index
    %11 = vector.load %arg5[%c0_9, %c0_10] : memref<1x128xf32, #tpu.memory_space<vmem>>, vector<1x128xf32>
    %12 = vector.broadcast %11 : vector<1x128xf32> to vector<128x128xf32>
    %13 = arith.addf %10, %12 : vector<128x128xf32>
    %cst_11 = arith.constant 0.000000e+00 : f32
    %14 = vector.broadcast %cst_11 : f32 to vector<128x128xf32>
    %15 = arith.maximumf %13, %14 : vector<128x128xf32>
    %16 = arith.truncf %15 : vector<128x128xf32> to vector<128x128xbf16>
    %c0_12 = arith.constant 0 : index
    %c0_13 = arith.constant 0 : index
    %17 = vector.load %arg6[%c0_12, %c0_13] : memref<128x64xbf16, #tpu.memory_space<vmem>>, vector<128x64xbf16>
    %cst_14 = arith.constant dense<0.000000e+00> : vector<128x64xf32>
    %18 = tpu.matmul %16, %17, %cst_14 {dimension_numbers = #tpu.dot_dimension_numbers<[1], [0], [0], [1], [0, 0, 1, 1], [], []>} : vector<128x128xbf16>, vector<128x64xbf16>, vector<128x64xf32> -> vector<128x64xf32>
    %c0_15 = arith.constant 0 : index
    %c0_16 = arith.constant 0 : index
    %19 = vector.load %arg7[%c0_15, %c0_16] : memref<1x64xf32, #tpu.memory_space<vmem>>, vector<1x64xf32>
    %20 = vector.broadcast %19 : vector<1x64xf32> to vector<128x64xf32>
    %21 = arith.addf %18, %20 : vector<128x64xf32>
    %cst_17 = arith.constant 0.000000e+00 : f32
    %22 = vector.broadcast %cst_17 : f32 to vector<128x64xf32>
    %23 = arith.maximumf %21, %22 : vector<128x64xf32>
    %c0_18 = arith.constant 0 : index
    %c0_19 = arith.constant 0 : index
    %24 = vector.load %arg8[%c0_18, %c0_19] : memref<1x64xbf16, #tpu.memory_space<vmem>>, vector<1x64xbf16>
    %25 = arith.truncf %23 : vector<128x64xf32> to vector<128x64xbf16>
    %cst_20 = arith.constant dense<0.000000e+00> : vector<1x128xf32>
    %26 = tpu.matmul %24, %25, %cst_20 {dimension_numbers = #tpu.dot_dimension_numbers<[1], [1], [0], [0], [0, 0, 1, 0], [], []>} : vector<1x64xbf16>, vector<128x64xbf16>, vector<1x128xf32> -> vector<1x128xf32>
    %c0_21 = arith.constant 0 : index
    %c0_22 = arith.constant 0 : index
    %27 = vector.load %arg9[%c0_21, %c0_22] : memref<1x1xf32, #tpu.memory_space<vmem>>, vector<1x1xf32>
    %28 = vector.broadcast %27 : vector<1x1xf32> to vector<1x128xf32>
    %29 = arith.addf %26, %28 : vector<1x128xf32>
    %30 = math.tanh %29 : vector<1x128xf32>
    %c0_23 = arith.constant 0 : index
    %c0_24 = arith.constant 0 : index
    %c0_25 = arith.constant 0 : index
    %31 = vector.load %arg10[%c0_23, %c0_24, %c0_25] : memref<1x1x128xf32, #tpu.memory_space<vmem>>, vector<1x1x128xf32>
    %32 = vector.shape_cast %31 : vector<1x1x128xf32> to vector<1x128xf32>
    %33 = vector.shape_cast %30 : vector<1x128xf32> to vector<1x1x128xf32>
    tpu.vector_store %arg10[%c0_23, %c0_24, %c0_25], %33 {strides = array<i32>} : memref<1x1x128xf32, #tpu.memory_space<vmem>>, vector<1x1x128xf32>,
    return
  }
  func.func @transform_0(%arg0: i32) -> (i32, i32) {
    %c0_i32 = arith.constant 0 : i32
    %c0_i32_0 = arith.constant 0 : i32
    return %arg0, %c0_i32 : i32, i32
  }
  func.func @transform_1(%arg0: i32) -> (i32, i32) {
    %c0_i32 = arith.constant 0 : i32
    %c0_i32_0 = arith.constant 0 : i32
    %c0_i32_1 = arith.constant 0 : i32
    return %c0_i32, %c0_i32_0 : i32, i32
  }
  func.func @transform_2(%arg0: i32) -> (i32, i32) {
    %c0_i32 = arith.constant 0 : i32
    %c0_i32_0 = arith.constant 0 : i32
    %c0_i32_1 = arith.constant 0 : i32
    return %c0_i32, %c0_i32_0 : i32, i32
  }
  func.func @transform_3(%arg0: i32) -> (i32, i32) {
    %c0_i32 = arith.constant 0 : i32
    %c0_i32_0 = arith.constant 0 : i32
    %c0_i32_1 = arith.constant 0 : i32
    return %c0_i32, %c0_i32_0 : i32, i32
  }
  func.func @transform_4(%arg0: i32) -> (i32, i32) {
    %c0_i32 = arith.constant 0 : i32
    %c0_i32_0 = arith.constant 0 : i32
    %c0_i32_1 = arith.constant 0 : i32
    return %c0_i32, %c0_i32_0 : i32, i32
  }
  func.func @transform_5(%arg0: i32) -> (i32, i32) {
    %c0_i32 = arith.constant 0 : i32
    %c0_i32_0 = arith.constant 0 : i32
    %c0_i32_1 = arith.constant 0 : i32
    return %c0_i32, %c0_i32_0 : i32, i32
  }
  func.func @transform_6(%arg0: i32) -> (i32, i32) {
    %c0_i32 = arith.constant 0 : i32
    %c0_i32_0 = arith.constant 0 : i32
    %c0_i32_1 = arith.constant 0 : i32
    return %c0_i32, %c0_i32_0 : i32, i32
  }
  func.func @transform_7(%arg0: i32) -> (i32, i32) {
    %c0_i32 = arith.constant 0 : i32
    %c0_i32_0 = arith.constant 0 : i32
    %c0_i32_1 = arith.constant 0 : i32
    return %c0_i32, %c0_i32_0 : i32, i32
  }
  func.func @transform_8(%arg0: i32) -> (i32, i32) {
    %c0_i32 = arith.constant 0 : i32
    %c0_i32_0 = arith.constant 0 : i32
    %c0_i32_1 = arith.constant 0 : i32
    return %c0_i32, %c0_i32_0 : i32, i32
  }
  func.func @transform_9(%arg0: i32) -> (i32, i32, i32) {
    %c0_i32 = arith.constant 0 : i32
    %c0_i32_0 = arith.constant 0 : i32
    %c0_i32_1 = arith.constant 0 : i32
    return %arg0, %c0_i32, %c0_i32_0 : i32, i32, i32
  }
}

</mosaic_0001>

<llo_original>
// kernel: tpu_custom_call.1
$region0: #{tpu_custom_call.1}
  #allocation0 [shape = 'u32[]', space=smem, size = 0x4, offset = 0x4, fixed_abs, tag = 'smem constant byte address 0x4 - core index']
  #allocation1 [shape = 'u32[72,128]{1,0:T(1,128)}', space=vmem, size = 0x9000, scoped, tag = 'internal scratch']
  #allocation2 [shape = 'f32[1,1]{1,0:T(1,128)S(1)}', space=vmem, size = 0x200, scoped, tag = 'scoped memory for tpu_custom_call.1']
  %s0 = inlined_call_operand.hbm [shape: bf16[256,768], index: 0, kind: input, shape index: {}]
  %s1 = inlined_call_operand.hbm [shape: bf16[768,256], index: 1, kind: input, shape index: {}]
  %s2 = inlined_call_operand.vmem [shape: f32[1,256], index: 2, kind: input, shape index: {}]
  %s3 = inlined_call_operand.hbm [shape: bf16[256,128], index: 3, kind: input, shape index: {}]
  %s4 = inlined_call_operand.vmem [shape: f32[1,128], index: 4, kind: input, shape index: {}]
  %s5 = inlined_call_operand.vmem [shape: bf16[128,64], index: 5, kind: input, shape index: {}]
  %s6 = inlined_call_operand.vmem [shape: f32[1,64], index: 6, kind: input, shape index: {}]
  %s7 = inlined_call_operand.vmem [shape: bf16[1,64], index: 7, kind: input, shape index: {}]
  %s8 = inlined_call_operand.<no memory space> [shape: f32[1,1], index: 8, kind: input, shape index: {}]
  %s9 = inlined_call_operand.hbm [shape: f32[2,1,128], index: 9, kind: output, shape index: {}]
  %s10 = sld [smem:[#allocation0]]
  $region81: #{tpu_custom_call.1} parent=0
    _
  %s12 = ssub.s32 1, %s10
  %s13 = scalar_select 0, %s12, %s10
  %v14 = vstv %s8
  %15 = vst [vmem:[#allocation2] sm:$0x1] %v14
  $region1: #{tpu_custom_call.1} parent=0
    #allocation3 [shape = 'u8[393216]{0}', space=vmem, size = 0x60000, scoped, tag = 'input window, operand 0']
    #allocation4 [shape = 's32[2]{0}', space=sflag, size = 0x8, scoped, tag = 'scoped memory for tpu_custom_call.1']
    #allocation5 [shape = 's32[2]{0}', space=sflag, size = 0x8, scoped, tag = 'scoped memory for tpu_custom_call.1']
    #allocation6 [shape = 'u8[393216]{0}', space=vmem, size = 0x60000, scoped, tag = 'input window, operand 1, single buffered']
    #allocation7 [shape = 's32[1]{0}', space=sflag, size = 0x4, scoped, tag = 'scoped memory for tpu_custom_call.1']
    #allocation8 [shape = 'u8[65536]{0}', space=vmem, size = 0x10000, scoped, tag = 'input window, operand 3, single buffered']
    #allocation9 [shape = 'u8[1024]{0}', space=vmem, size = 0x400, scoped, tag = 'output window, operand 0']
    %16 = vsyncpa [#allocation4], 0
    %s17 = scalar_lea.sflag [#allocation4], 1
    %18 = vsyncpa %s17, 0
    %19 = vsyncpa [#allocation7], 0
    %20 = vsyncpa [#allocation5], 0
    %s21 = scalar_lea.sflag [#allocation5], 1
    %22 = vsyncpa %s21, 0
    loop: start=0, step=1, limit=4
    $region2: #{tpu_custom_call.1} parent=1 // loop_pre_header
      _
    $region3: #{tpu_custom_call.1} parent=1 // loop_header
      %s24 = sphi 0, %s28
      %p25 = scmp.ge.s32.totalorder %s24, 4
      %s34 = sphi 0, %s36
      %s37 = sphi 0, %s34
      %s38 = sphi 0, %s37
      %s54 = sphi 0, %s38
      %s58 = sphi 0, %s58
      %s60 = sphi 0, %s58
      %s61 = sphi 0, %s60
      %s75 = sphi 0, %s61
      %s79 = sphi 0, %s79
      %s81 = sphi 0, %s79
      %s82 = sphi 0, %s81
      %s96 = sphi 0, %s82
      %s100 = sphi 0, %s100
      %s102 = sphi 0, %s100
      %s103 = sphi 0, %s102
      %s117 = sphi 0, %s103
      %s121 = sphi 0, %s121
      %s123 = sphi 0, %s121
      %s124 = sphi 0, %s123
      %s138 = sphi 0, %s124
      %s142 = sphi 0, %s142
      %s144 = sphi 0, %s142
      %s145 = sphi 0, %s144
      %s159 = sphi 0, %s145
      %s163 = sphi 0, %s163
      %s165 = sphi 0, %s163
      %s166 = sphi 0, %s165
      %s180 = sphi 0, %s166
      %s184 = sphi 0, %s184
      %s186 = sphi 0, %s184
      %s187 = sphi 0, %s186
      %s201 = sphi 0, %s187
      %s205 = sphi 0, %s205
      %s207 = sphi 0, %s205
      %s208 = sphi 0, %s207
      %s222 = sphi 0, %s208
      %s228 = sphi 0, %s230
      %s231 = sphi 0, %s228
      %s232 = sphi 0, %s231
      %s248 = sphi 0, %s232
    $region4: #{tpu_custom_call.1} parent=1 // loop_header_branch
      %27 = sbr.rel (%p25) target = $region8
    $region5: #{tpu_custom_call.1} parent=1 // loop_body
      %s29 = ssub.s32 %s24, 1
      %s30 = ssub.s32 %s24, 2
      %s31 = sadd.s32 %s24, 1
      %s32 = ssub.s32 %s24, %s31
      %p33 = scmp.eq.s32.totalorder %s32, 0
      %s35 = sadd.s32 %s34, 1
      %s36 = scalar_select %p33, %s34, %s35
      %p39 = pneg %p33
      %p40 = scmp.eq.s32.totalorder %s24, 1
      %p41 = por %p39, %p40
      %p42 = scmp.ne.s32.totalorder %s34, %s37
      %p43 = scmp.eq.s32.totalorder %s24, 0
      %p44 = por %p42, %p43
      %p45 = scmp.ne.s32.totalorder %s34, %s37
      %p46 = scmp.eq.s32.totalorder %s29, 1
      %p47 = por %p45, %p46
      %p48 = scmp.ne.s32.totalorder %s37, %s38
      %p49 = scmp.eq.s32.totalorder %s29, 0
      %p50 = por %p48, %p49
      %p51 = scmp.ne.s32.totalorder %s37, %s38
      %p52 = scmp.eq.s32.totalorder %s30, 1
      %p53 = por %p51, %p52
      %p55 = scmp.ne.s32.totalorder %s38, %s54
      %p56 = scmp.eq.s32.totalorder %s30, 0
      %p57 = por %p55, %p56
      %s59 = sadd.s32 %s58, 1
      %p62 = scmp.eq.s32.totalorder %s24, 1
      %p63 = scmp.ne.s32.totalorder %s58, %s60
      %p64 = scmp.eq.s32.totalorder %s24, 0
      %p65 = por %p63, %p64
      %p66 = scmp.ne.s32.totalorder %s58, %s60
      %p67 = scmp.eq.s32.totalorder %s29, 1
      %p68 = por %p66, %p67
      %p69 = scmp.ne.s32.totalorder %s60, %s61
      %p70 = scmp.eq.s32.totalorder %s29, 0
      %p71 = por %p69, %p70
      %p72 = scmp.ne.s32.totalorder %s60, %s61
      %p73 = scmp.eq.s32.totalorder %s30, 1
      %p74 = por %p72, %p73
      %p76 = scmp.ne.s32.totalorder %s61, %s75
      %p77 = scmp.eq.s32.totalorder %s30, 0
      %p78 = por %p76, %p77
      %s80 = sadd.s32 %s79, 1
      %p83 = scmp.eq.s32.totalorder %s24, 1
      %p84 = scmp.ne.s32.totalorder %s79, %s81
      %p85 = scmp.eq.s32.totalorder %s24, 0
      %p86 = por %p84, %p85
      %p87 = scmp.ne.s32.totalorder %s79, %s81
      %p88 = scmp.eq.s32.totalorder %s29, 1
      %p89 = por %p87, %p88
      %p90 = scmp.ne.s32.totalorder %s81, %s82
      %p91 = scmp.eq.s32.totalorder %s29, 0
      %p92 = por %p90, %p91
      %p93 = scmp.ne.s32.totalorder %s81, %s82
      %p94 = scmp.eq.s32.totalorder %s30, 1
      %p95 = por %p93, %p94
      %p97 = scmp.ne.s32.totalorder %s82, %s96
      %p98 = scmp.eq.s32.totalorder %s30, 0
      %p99 = por %p97, %p98
      %s101 = sadd.s32 %s100, 1
      %p104 = scmp.eq.s32.totalorder %s24, 1
      %p105 = scmp.ne.s32.totalorder %s100, %s102
      %p106 = scmp.eq.s32.totalorder %s24, 0
      %p107 = por %p105, %p106
      %p108 = scmp.ne.s32.totalorder %s100, %s102
      %p109 = scmp.eq.s32.totalorder %s29, 1
      %p110 = por %p108, %p109
      %p111 = scmp.ne.s32.totalorder %s102, %s103
      %p112 = scmp.eq.s32.totalorder %s29, 0
      %p113 = por %p111, %p112
      %p114 = scmp.ne.s32.totalorder %s102, %s103
      %p115 = scmp.eq.s32.totalorder %s30, 1
      %p116 = por %p114, %p115
      %p118 = scmp.ne.s32.totalorder %s103, %s117
      %p119 = scmp.eq.s32.totalorder %s30, 0
      %p120 = por %p118, %p119
      %s122 = sadd.s32 %s121, 1
      %p125 = scmp.eq.s32.totalorder %s24, 1
      %p126 = scmp.ne.s32.totalorder %s121, %s123
      %p127 = scmp.eq.s32.totalorder %s24, 0
      %p128 = por %p126, %p127
      %p129 = scmp.ne.s32.totalorder %s121, %s123
      %p130 = scmp.eq.s32.totalorder %s29, 1
      %p131 = por %p129, %p130
      %p132 = scmp.ne.s32.totalorder %s123, %s124
      %p133 = scmp.eq.s32.totalorder %s29, 0
      %p134 = por %p132, %p133
      %p135 = scmp.ne.s32.totalorder %s123, %s124
      %p136 = scmp.eq.s32.totalorder %s30, 1
      %p137 = por %p135, %p136
      %p139 = scmp.ne.s32.totalorder %s124, %s138
      %p140 = scmp.eq.s32.totalorder %s30, 0
      %p141 = por %p139, %p140
      %s143 = sadd.s32 %s142, 1
      %p146 = scmp.eq.s32.totalorder %s24, 1
      %p147 = scmp.ne.s32.totalorder %s142, %s144
      %p148 = scmp.eq.s32.totalorder %s24, 0
      %p149 = por %p147, %p148
      %p150 = scmp.ne.s32.totalorder %s142, %s144
      %p151 = scmp.eq.s32.totalorder %s29, 1
      %p152 = por %p150, %p151
      %p153 = scmp.ne.s32.totalorder %s144, %s145
      %p154 = scmp.eq.s32.totalorder %s29, 0
      %p155 = por %p153, %p154
      %p156 = scmp.ne.s32.totalorder %s144, %s145
      %p157 = scmp.eq.s32.totalorder %s30, 1
      %p158 = por %p156, %p157
      %p160 = scmp.ne.s32.totalorder %s145, %s159
      %p161 = scmp.eq.s32.totalorder %s30, 0
      %p162 = por %p160, %p161
      %s164 = sadd.s32 %s163, 1
      %p167 = scmp.eq.s32.totalorder %s24, 1
      %p168 = scmp.ne.s32.totalorder %s163, %s165
      %p169 = scmp.eq.s32.totalorder %s24, 0
      %p170 = por %p168, %p169
      %p171 = scmp.ne.s32.totalorder %s163, %s165
      %p172 = scmp.eq.s32.totalorder %s29, 1
      %p173 = por %p171, %p172
      %p174 = scmp.ne.s32.totalorder %s165, %s166
      %p175 = scmp.eq.s32.totalorder %s29, 0
      %p176 = por %p174, %p175
      %p177 = scmp.ne.s32.totalorder %s165, %s166
      %p178 = scmp.eq.s32.totalorder %s30, 1
      %p179 = por %p177, %p178
      %p181 = scmp.ne.s32.totalorder %s166, %s180
      %p182 = scmp.eq.s32.totalorder %s30, 0
      %p183 = por %p181, %p182
      %s185 = sadd.s32 %s184, 1
      %p188 = scmp.eq.s32.totalorder %s24, 1
      %p189 = scmp.ne.s32.totalorder %s184, %s186
      %p190 = scmp.eq.s32.totalorder %s24, 0
      %p191 = por %p189, %p190
      %p192 = scmp.ne.s32.totalorder %s184, %s186
      %p193 = scmp.eq.s32.totalorder %s29, 1
      %p194 = por %p192, %p193
      %p195 = scmp.ne.s32.totalorder %s186, %s187
      %p196 = scmp.eq.s32.totalorder %s29, 0
      %p197 = por %p195, %p196
      %p198 = scmp.ne.s32.totalorder %s186, %s187
      %p199 = scmp.eq.s32.totalorder %s30, 1
      %p200 = por %p198, %p199
      %p202 = scmp.ne.s32.totalorder %s187, %s201
      %p203 = scmp.eq.s32.totalorder %s30, 0
      %p204 = por %p202, %p203
      %s206 = sadd.s32 %s205, 1
      %p209 = scmp.eq.s32.totalorder %s24, 1
      %p210 = scmp.ne.s32.totalorder %s205, %s207
      %p211 = scmp.eq.s32.totalorder %s24, 0
      %p212 = por %p210, %p211
      %p213 = scmp.ne.s32.totalorder %s205, %s207
      %p214 = scmp.eq.s32.totalorder %s29, 1
      %p215 = por %p213, %p214
      %p216 = scmp.ne.s32.totalorder %s207, %s208
      %p217 = scmp.eq.s32.totalorder %s29, 0
      %p218 = por %p216, %p217
      %p219 = scmp.ne.s32.totalorder %s207, %s208
      %p220 = scmp.eq.s32.totalorder %s30, 1
      %p221 = por %p219, %p220
      %p223 = scmp.ne.s32.totalorder %s208, %s222
      %p224 = scmp.eq.s32.totalorder %s30, 0
      %p225 = por %p223, %p224
      %s226 = ssub.s32 %s24, %s31
      %p227 = scmp.eq.s32.totalorder %s226, 0
      %s229 = sadd.s32 %s228, 1
      %s230 = scalar_select %p227, %s228, %s229
      %p233 = pneg %p227
      %p234 = scmp.eq.s32.totalorder %s24, 1
      %p235 = por %p233, %p234
      %p236 = scmp.ne.s32.totalorder %s228, %s231
      %p237 = scmp.eq.s32.totalorder %s24, 0
      %p238 = por %p236, %p237
      %p239 = scmp.ne.s32.totalorder %s228, %s231
      %p240 = scmp.eq.s32.totalorder %s29, 1
      %p241 = por %p239, %p240
      %p242 = scmp.ne.s32.totalorder %s231, %s232
      %p243 = scmp.eq.s32.totalorder %s29, 0
      %p244 = por %p242, %p243
      %p245 = scmp.ne.s32.totalorder %s231, %s232
      %p246 = scmp.eq.s32.totalorder %s30, 1
      %p247 = por %p245, %p246
      %p249 = scmp.ne.s32.totalorder %s232, %s248
      %p250 = scmp.eq.s32.totalorder %s30, 0
      %p251 = por %p249, %p250
      %p252 = scmp.le.s32.totalorder 1, %s24
      %p253 = scmp.lt.s32.totalorder %s24, 3
      %p254 = pnand %p252, %p253
      %p255 = pneg %p254
      // Predicated region
      $region9: #{tpu_custom_call.1} parent=5 // pred_check
        _
      $region10: #{tpu_custom_call.1} parent=5 // pred_check_branch
        %257 = sbr.rel (%p254) target = $region12
      $region11: #{tpu_custom_call.1} parent=5 // pred_region
        %s258 = ssub.s32 %s24, 1
        // Predicated region
        $region13: #{tpu_custom_call.1} parent=11 // pred_check
          %p259 = pneg %p71
        $region14: #{tpu_custom_call.1} parent=11 // pred_check_branch
          %261 = sbr.rel (%p259) target = $region16
        $region15: #{tpu_custom_call.1} parent=11 // pred_region
          %263 = vsyncadd [#allocation7], 0
          %s264 = sshll.u32 %s1, 4
          %s265 = int_to_ptr.hbm [resolvable:$true] %s264
          %s266 = sshll.u32 [#allocation6], 4
          %s267 = int_to_ptr.vmem [resolvable:$true] %s266
          %272 = dma.hbm_to_vmem [thread:$0]  %s265, 12288, %s267, [#allocation7], 128, 128, 8
        $region16: #{tpu_custom_call.1} parent=11 // pred_fallthru
          _
        // Predicated region
        $region17: #{tpu_custom_call.1} parent=11 // pred_check
          %p273 = pneg %p92
        $region18: #{tpu_custom_call.1} parent=11 // pred_check_branch
          %275 = sbr.rel (%p273) target = $region20
        $region19: #{tpu_custom_call.1} parent=11 // pred_region
          _
        $region20: #{tpu_custom_call.1} parent=11 // pred_fallthru
          _
        // Predicated region
        $region21: #{tpu_custom_call.1} parent=11 // pred_check
          %p276 = pneg %p113
        $region22: #{tpu_custom_call.1} parent=11 // pred_check_branch
          %278 = sbr.rel (%p276) target = $region24
        $region23: #{tpu_custom_call.1} parent=11 // pred_region
          %280 = vsyncadd [#allocation7], 0
          %s281 = sshll.u32 %s3, 4
          %s282 = int_to_ptr.hbm [resolvable:$true] %s281
          %s283 = sshll.u32 [#allocation8], 4
          %s284 = int_to_ptr.vmem [resolvable:$true] %s283
          %289 = dma.hbm_to_vmem [thread:$0]  %s282, 2048, %s284, [#allocation7], 64, 64, 4
        $region24: #{tpu_custom_call.1} parent=11 // pred_fallthru
          _
        // Predicated region
        $region25: #{tpu_custom_call.1} parent=11 // pred_check
          %p290 = pneg %p134
        $region26: #{tpu_custom_call.1} parent=11 // pred_check_branch
          %292 = sbr.rel (%p290) target = $region28
        $region27: #{tpu_custom_call.1} parent=11 // pred_region
          _
        $region28: #{tpu_custom_call.1} parent=11 // pred_fallthru
          _
        // Predicated region
        $region29: #{tpu_custom_call.1} parent=11 // pred_check
          %p293 = pneg %p155
        $region30: #{tpu_custom_call.1} parent=11 // pred_check_branch
          %295 = sbr.rel (%p293) target = $region32
        $region31: #{tpu_custom_call.1} parent=11 // pred_region
          _
        $region32: #{tpu_custom_call.1} parent=11 // pred_fallthru
          _
        // Predicated region
        $region33: #{tpu_custom_call.1} parent=11 // pred_check
          %p296 = pneg %p176
        $region34: #{tpu_custom_call.1} parent=11 // pred_check_branch
          %298 = sbr.rel (%p296) target = $region36
        $region35: #{tpu_custom_call.1} parent=11 // pred_region
          _
        $region36: #{tpu_custom_call.1} parent=11 // pred_fallthru
          _
        // Predicated region
        $region37: #{tpu_custom_call.1} parent=11 // pred_check
          %p299 = pneg %p197
        $region38: #{tpu_custom_call.1} parent=11 // pred_check_branch
          %301 = sbr.rel (%p299) target = $region40
        $region39: #{tpu_custom_call.1} parent=11 // pred_region
          _
        $region40: #{tpu_custom_call.1} parent=11 // pred_fallthru
          _
        // Predicated region
        $region41: #{tpu_custom_call.1} parent=11 // pred_check
          %p302 = pneg %p218
        $region42: #{tpu_custom_call.1} parent=11 // pred_check_branch
          %304 = sbr.rel (%p302) target = $region44
        $region43: #{tpu_custom_call.1} parent=11 // pred_region
          _
        $region44: #{tpu_custom_call.1} parent=11 // pred_fallthru
          _
      $region12: #{tpu_custom_call.1} parent=5 // pred_fallthru
        _
      %p305 = scmp.lt.s32.totalorder %s24, 2
      // Predicated region
      $region45: #{tpu_custom_call.1} parent=5 // pred_check
        %p306 = pneg %p305
      $region46: #{tpu_custom_call.1} parent=5 // pred_check_branch
        %308 = sbr.rel (%p306) target = $region48
      $region47: #{tpu_custom_call.1} parent=5 // pred_region
        // Predicated region
        $region49: #{tpu_custom_call.1} parent=47 // pred_check
          %p309 = pneg %p44
        $region50: #{tpu_custom_call.1} parent=47 // pred_check_branch
          %311 = sbr.rel (%p309) target = $region52
        $region51: #{tpu_custom_call.1} parent=47 // pred_region
          %s312 = sand.u32 %s34, 1
          %s313 = scalar_lea.sflag [#allocation4], %s312
          %s314 = sand.u32 %s34, 1
          %s315 = smul.addr %s314, 384
          %s316 = scalar_lea.vmem [#allocation3], %s315
          %s317 = smul.u32 16, %s24
          %319 = vsyncadd %s313, 0
          %s320 = smul.addr %s317, 6
          %s321 = smul.addr %s320, 4
          %s322 = scalar_lea.hbm %s0, %s321
          %s323 = sshll.u32 %s322, 4
          %s324 = int_to_ptr.hbm [resolvable:$true] %s323
          %s325 = sshll.u32 %s316, 4
          %s326 = int_to_ptr.vmem [resolvable:$true] %s325
          %331 = dma.hbm_to_vmem [thread:$0]  %s324, 6144, %s326, %s313, 384, 384, 24
        $region52: #{tpu_custom_call.1} parent=47 // pred_fallthru
          _
      $region48: #{tpu_custom_call.1} parent=5 // pred_fallthru
        _
      %p332 = scmp.le.s32.totalorder 1, %s24
      %p333 = scmp.lt.s32.totalorder %s24, 3
      %p334 = pnand %p332, %p333
      %p335 = pneg %p334
      // Predicated region
      $region53: #{tpu_custom_call.1} parent=5 // pred_check
        _
      $region54: #{tpu_custom_call.1} parent=5 // pred_check_branch
        %337 = sbr.rel (%p334) target = $region56
      $region55: #{tpu_custom_call.1} parent=5 // pred_region
        %s338 = ssub.s32 %s24, 1
        %s339 = sand.u32 %s37, 1
        %s340 = scalar_lea.sflag [#allocation4], %s339
        %s341 = sand.u32 %s37, 1
        %s342 = smul.addr %s341, 384
        %s343 = scalar_lea.vmem [#allocation3], %s342
        // Predicated region
        $region57: #{tpu_custom_call.1} parent=55 // pred_check
          %p344 = pneg %p50
        $region58: #{tpu_custom_call.1} parent=55 // pred_check_branch
          %346 = sbr.rel (%p344) target = $region60
        $region59: #{tpu_custom_call.1} parent=55 // pred_region
          %348 = dma.done %s340, 6144
        $region60: #{tpu_custom_call.1} parent=55 // pred_fallthru
          _
        // Predicated region
        $region61: #{tpu_custom_call.1} parent=55 // pred_check
          %p349 = pneg %p71
        $region62: #{tpu_custom_call.1} parent=55 // pred_check_branch
          %351 = sbr.rel (%p349) target = $region64
        $region63: #{tpu_custom_call.1} parent=55 // pred_region
          %353 = dma.done [#allocation7], 12288
        $region64: #{tpu_custom_call.1} parent=55 // pred_fallthru
          _
        // Predicated region
        $region65: #{tpu_custom_call.1} parent=55 // pred_check
          %p354 = pneg %p113
        $region66: #{tpu_custom_call.1} parent=55 // pred_check_branch
          %356 = sbr.rel (%p354) target = $region68
        $region67: #{tpu_custom_call.1} parent=55 // pred_region
          %358 = dma.done [#allocation7], 2048
        $region68: #{tpu_custom_call.1} parent=55 // pred_fallthru
          _
        %s359 = sand.u32 %s37, 1
        %s360 = scalar_lea.sflag [#allocation4], %s359
        %s361 = sand.u32 %s37, 1
        %s362 = smul.addr %s361, 384
        %s363 = scalar_lea.vmem [#allocation3], %s362
        %p364 = pneg %p50
        %p365 = pneg %p47
        %p366 = pneg %p71
        %p367 = pneg %p68
        %p368 = pneg %p92
        %p369 = pneg %p89
        %p370 = pneg %p113
        %p371 = pneg %p110
        %p372 = pneg %p134
        %p373 = pneg %p131
        %p374 = pneg %p155
        %p375 = pneg %p152
        %p376 = pneg %p176
        %p377 = pneg %p173
        %p378 = pneg %p197
        %p379 = pneg %p194
        %p380 = pneg %p218
        %p381 = pneg %p215
        %p382 = pneg %p244
        %p383 = pneg %p241
        %s384 = sand.u32 %s231, 1
        %s385 = scalar_lea.sflag [#allocation5], %s384
        %s386 = sand.u32 %s231, 1
        %s387 = scalar_lea.vmem [#allocation9], %s386
        %s388 = smul.u32 16, %s29
        %v389 = vld [vmem:[%s343] sm:$0xff]
        %v390 = vld [vmem:[%s343 + $0x8] sm:$0xff]
        %v391 = vld [vmem:[%s343 + $0x10] sm:$0xff]
        %v392 = vld [vmem:[%s343 + $0x18] sm:$0xff]
        %v393 = vld [vmem:[%s343 + $0x20] sm:$0xff]
        %v394 = vld [vmem:[%s343 + $0x28] sm:$0xff]
        %v395 = vld [vmem:[%s343 + $0x30] sm:$0xff]
        %v396 = vld [vmem:[%s343 + $0x38] sm:$0xff]
        %v397 = vld [vmem:[%s343 + $0x40] sm:$0xff]
        %v398 = vld [vmem:[%s343 + $0x48] sm:$0xff]
        %v399 = vld [vmem:[%s343 + $0x50] sm:$0xff]
        %v400 = vld [vmem:[%s343 + $0x58] sm:$0xff]
        %v401 = vld [vmem:[%s343 + $0x60] sm:$0xff]
        %v402 = vld [vmem:[%s343 + $0x68] sm:$0xff]
        %v403 = vld [vmem:[%s343 + $0x70] sm:$0xff]
        %v404 = vld [vmem:[%s343 + $0x78] sm:$0xff]
        %v405 = vld [vmem:[%s343 + $0x80] sm:$0xff]
        %v406 = vld [vmem:[%s343 + $0x88] sm:$0xff]
        %v407 = vld [vmem:[%s343 + $0x90] sm:$0xff]
        %v408 = vld [vmem:[%s343 + $0x98] sm:$0xff]
        %v409 = vld [vmem:[%s343 + $0xa0] sm:$0xff]
        %v410 = vld [vmem:[%s343 + $0xa8] sm:$0xff]
        %v411 = vld [vmem:[%s343 + $0xb0] sm:$0xff]
        %v412 = vld [vmem:[%s343 + $0xb8] sm:$0xff]
        %v413 = vld [vmem:[%s343 + $0xc0] sm:$0xff]
        %v414 = vld [vmem:[%s343 + $0xc8] sm:$0xff]
        %v415 = vld [vmem:[%s343 + $0xd0] sm:$0xff]
        %v416 = vld [vmem:[%s343 + $0xd8] sm:$0xff]
        %v417 = vld [vmem:[%s343 + $0xe0] sm:$0xff]
        %v418 = vld [vmem:[%s343 + $0xe8] sm:$0xff]
        %v419 = vld [vmem:[%s343 + $0xf0] sm:$0xff]
        %v420 = vld [vmem:[%s343 + $0xf8] sm:$0xff]
        %v421 = vld [vmem:[%s343 + $0x100] sm:$0xff]
        %v422 = vld [vmem:[%s343 + $0x108] sm:$0xff]
        %v423 = vld [vmem:[%s343 + $0x110] sm:$0xff]
        %v424 = vld [vmem:[%s343 + $0x118] sm:$0xff]
        %v425 = vld [vmem:[%s343 + $0x120] sm:$0xff]
        %v426 = vld [vmem:[%s343 + $0x128] sm:$0xff]
        %v427 = vld [vmem:[%s343 + $0x130] sm:$0xff]
        %v428 = vld [vmem:[%s343 + $0x138] sm:$0xff]
        %v429 = vld [vmem:[%s343 + $0x140] sm:$0xff]
        %v430 = vld [vmem:[%s343 + $0x148] sm:$0xff]
        %v431 = vld [vmem:[%s343 + $0x150] sm:$0xff]
        %v432 = vld [vmem:[%s343 + $0x158] sm:$0xff]
        %v433 = vld [vmem:[%s343 + $0x160] sm:$0xff]
        %v434 = vld [vmem:[%s343 + $0x168] sm:$0xff]
        %v435 = vld [vmem:[%s343 + $0x170] sm:$0xff]
        %v436 = vld [vmem:[%s343 + $0x178] sm:$0xff]
        %v437 = vld [vmem:[#allocation6] sm:$0xff]
        %v438 = vld [vmem:[#allocation6 + $0x8] sm:$0xff]
        %v439 = vld [vmem:[#allocation6 + $0x10] sm:$0xff]
        %v440 = vld [vmem:[#allocation6 + $0x18] sm:$0xff]
        %v441 = vld [vmem:[#allocation6 + $0x20] sm:$0xff]
        %v442 = vld [vmem:[#allocation6 + $0x28] sm:$0xff]
        %v443 = vld [vmem:[#allocation6 + $0x30] sm:$0xff]
        %v444 = vld [vmem:[#allocation6 + $0x38] sm:$0xff]
        %v445 = vld [vmem:[#allocation6 + $0x40] sm:$0xff]
        %v446 = vld [vmem:[#allocation6 + $0x48] sm:$0xff]
        %v447 = vld [vmem:[#allocation6 + $0x50] sm:$0xff]
        %v448 = vld [vmem:[#allocation6 + $0x58] sm:$0xff]
        %v449 = vld [vmem:[#allocation6 + $0x60] sm:$0xff]
        %v450 = vld [vmem:[#allocation6 + $0x68] sm:$0xff]
        %v451 = vld [vmem:[#allocation6 + $0x70] sm:$0xff]
        %v452 = vld [vmem:[#allocation6 + $0x78] sm:$0xff]
        %v453 = vld [vmem:[#allocation6 + $0x80] sm:$0xff]
        %v454 = vld [vmem:[#allocation6 + $0x88] sm:$0xff]
        %v455 = vld [vmem:[#allocation6 + $0x90] sm:$0xff]
        %v456 = vld [vmem:[#allocation6 + $0x98] sm:$0xff]
        %v457 = vld [vmem:[#allocation6 + $0xa0] sm:$0xff]
        %v458 = vld [vmem:[#allocation6 + $0xa8] sm:$0xff]
        %v459 = vld [vmem:[#allocation6 + $0xb0] sm:$0xff]
        %v460 = vld [vmem:[#allocation6 + $0xb8] sm:$0xff]
        %v461 = vld [vmem:[#allocation6 + $0xc0] sm:$0xff]
        %v462 = vld [vmem:[#allocation6 + $0xc8] sm:$0xff]
        %v463 = vld [vmem:[#allocation6 + $0xd0] sm:$0xff]
        %v464 = vld [vmem:[#allocation6 + $0xd8] sm:$0xff]
        %v465 = vld [vmem:[#allocation6 + $0xe0] sm:$0xff]
        %v466 = vld [vmem:[#allocation6 + $0xe8] sm:$0xff]
        %v467 = vld [vmem:[#allocation6 + $0xf0] sm:$0xff]
        %v468 = vld [vmem:[#allocation6 + $0xf8] sm:$0xff]
        %v469 = vld [vmem:[#allocation6 + $0x100] sm:$0xff]
        %v470 = vld [vmem:[#allocation6 + $0x108] sm:$0xff]
        %v471 = vld [vmem:[#allocation6 + $0x110] sm:$0xff]
        %v472 = vld [vmem:[#allocation6 + $0x118] sm:$0xff]
        %v473 = vld [vmem:[#allocation6 + $0x120] sm:$0xff]
        %v474 = vld [vmem:[#allocation6 + $0x128] sm:$0xff]
        %v475 = vld [vmem:[#allocation6 + $0x130] sm:$0xff]
        %v476 = vld [vmem:[#allocation6 + $0x138] sm:$0xff]
        %v477 = vld [vmem:[#allocation6 + $0x140] sm:$0xff]
        %v478 = vld [vmem:[#allocation6 + $0x148] sm:$0xff]
        %v479 = vld [vmem:[#allocation6 + $0x150] sm:$0xff]
        %v480 = vld [vmem:[#allocation6 + $0x158] sm:$0xff]
        %v481 = vld [vmem:[#allocation6 + $0x160] sm:$0xff]
        %v482 = vld [vmem:[#allocation6 + $0x168] sm:$0xff]
        %v483 = vld [vmem:[#allocation6 + $0x170] sm:$0xff]
        %v484 = vld [vmem:[#allocation6 + $0x178] sm:$0xff]
        %v485 = vld [vmem:[#allocation6 + $0x180] sm:$0xff]
        %v486 = vld [vmem:[#allocation6 + $0x188] sm:$0xff]
        %v487 = vld [vmem:[#allocation6 + $0x190] sm:$0xff]
        %v488 = vld [vmem:[#allocation6 + $0x198] sm:$0xff]
        %v489 = vld [vmem:[#allocation6 + $0x1a0] sm:$0xff]
        %v490 = vld [vmem:[#allocation6 + $0x1a8] sm:$0xff]
        %v491 = vld [vmem:[#allocation6 + $0x1b0] sm:$0xff]
        %v492 = vld [vmem:[#allocation6 + $0x1b8] sm:$0xff]
        %v493 = vld [vmem:[#allocation6 + $0x1c0] sm:$0xff]
        %v494 = vld [vmem:[#allocation6 + $0x1c8] sm:$0xff]
        %v495 = vld [vmem:[#allocation6 + $0x1d0] sm:$0xff]
        %v496 = vld [vmem:[#allocation6 + $0x1d8] sm:$0xff]
        %v497 = vld [vmem:[#allocation6 + $0x1e0] sm:$0xff]
        %v498 = vld [vmem:[#allocation6 + $0x1e8] sm:$0xff]
        %v499 = vld [vmem:[#allocation6 + $0x1f0] sm:$0xff]
        %v500 = vld [vmem:[#allocation6 + $0x1f8] sm:$0xff]
        %v501 = vld [vmem:[#allocation6 + $0x200] sm:$0xff]
        %v502 = vld [vmem:[#allocation6 + $0x208] sm:$0xff]
        %v503 = vld [vmem:[#allocation6 + $0x210] sm:$0xff]
        %v504 = vld [vmem:[#allocation6 + $0x218] sm:$0xff]
        %v505 = vld [vmem:[#allocation6 + $0x220] sm:$0xff]
        %v506 = vld [vmem:[#allocation6 + $0x228] sm:$0xff]
        %v507 = vld [vmem:[#allocation6 + $0x230] sm:$0xff]
        %v508 = vld [vmem:[#allocation6 + $0x238] sm:$0xff]
        %v509 = vld [vmem:[#allocation6 + $0x240] sm:$0xff]
        %v510 = vld [vmem:[#allocation6 + $0x248] sm:$0xff]
        %v511 = vld [vmem:[#allocation6 + $0x250] sm:$0xff]
        %v512 = vld [vmem:[#allocation6 + $0x258] sm:$0xff]
        %v513 = vld [vmem:[#allocation6 + $0x260] sm:$0xff]
        %v514 = vld [vmem:[#allocation6 + $0x268] sm:$0xff]
        %v515 = vld [vmem:[#allocation6 + $0x270] sm:$0xff]
        %v516 = vld [vmem:[#allocation6 + $0x278] sm:$0xff]
        %v517 = vld [vmem:[#allocation6 + $0x280] sm:$0xff]
        %v518 = vld [vmem:[#allocation6 + $0x288] sm:$0xff]
        %v519 = vld [vmem:[#allocation6 + $0x290] sm:$0xff]
        %v520 = vld [vmem:[#allocation6 + $0x298] sm:$0xff]
        %v521 = vld [vmem:[#allocation6 + $0x2a0] sm:$0xff]
        %v522 = vld [vmem:[#allocation6 + $0x2a8] sm:$0xff]
        %v523 = vld [vmem:[#allocation6 + $0x2b0] sm:$0xff]
        %v524 = vld [vmem:[#allocation6 + $0x2b8] sm:$0xff]
        %v525 = vld [vmem:[#allocation6 + $0x2c0] sm:$0xff]
        %v526 = vld [vmem:[#allocation6 + $0x2c8] sm:$0xff]
        %v527 = vld [vmem:[#allocation6 + $0x2d0] sm:$0xff]
        %v528 = vld [vmem:[#allocation6 + $0x2d8] sm:$0xff]
        %v529 = vld [vmem:[#allocation6 + $0x2e0] sm:$0xff]
        %v530 = vld [vmem:[#allocation6 + $0x2e8] sm:$0xff]
        %v531 = vld [vmem:[#allocation6 + $0x2f0] sm:$0xff]
        %v532 = vld [vmem:[#allocation6 + $0x2f8] sm:$0xff]
        %v533 = vld [vmem:[%s2] sm:$0x3]
        %v535 = vperm.slane %v533, 0
        %v536 = vperm.slane %v533, 1
        %v587 = vunpack.c.l.b16 %v389
        %v588 = vunpack.c.h.b16 %v389
        %v589 = vunpack.c.l.b16 %v390
        %v590 = vunpack.c.h.b16 %v390
        %v591 = vunpack.c.l.b16 %v391
        %v592 = vunpack.c.h.b16 %v391
        %v593 = vunpack.c.l.b16 %v392
        %v594 = vunpack.c.h.b16 %v392
        %v595 = vunpack.c.l.b16 %v393
        %v596 = vunpack.c.h.b16 %v393
        %v597 = vunpack.c.l.b16 %v394
        %v598 = vunpack.c.h.b16 %v394
        %v599 = vunpack.c.l.b16 %v395
        %v600 = vunpack.c.h.b16 %v395
        %v601 = vunpack.c.l.b16 %v396
        %v602 = vunpack.c.h.b16 %v396
        %v603 = vunpack.c.l.b16 %v397
        %v604 = vunpack.c.h.b16 %v397
        %v605 = vunpack.c.l.b16 %v398
        %v606 = vunpack.c.h.b16 %v398
        %v607 = vunpack.c.l.b16 %v399
        %v608 = vunpack.c.h.b16 %v399
        %v609 = vunpack.c.l.b16 %v400
        %v610 = vunpack.c.h.b16 %v400
        %v611 = vunpack.c.l.b16 %v401
        %v612 = vunpack.c.h.b16 %v401
        %v613 = vunpack.c.l.b16 %v402
        %v614 = vunpack.c.h.b16 %v402
        %v615 = vunpack.c.l.b16 %v403
        %v616 = vunpack.c.h.b16 %v403
        %v617 = vunpack.c.l.b16 %v404
        %v618 = vunpack.c.h.b16 %v404
        %v619 = vunpack.c.l.b16 %v405
        %v620 = vunpack.c.h.b16 %v405
        %v621 = vunpack.c.l.b16 %v406
        %v622 = vunpack.c.h.b16 %v406
        %v623 = vunpack.c.l.b16 %v407
        %v624 = vunpack.c.h.b16 %v407
        %v625 = vunpack.c.l.b16 %v408
        %v626 = vunpack.c.h.b16 %v408
        %v627 = vunpack.c.l.b16 %v409
        %v628 = vunpack.c.h.b16 %v409
        %v629 = vunpack.c.l.b16 %v410
        %v630 = vunpack.c.h.b16 %v410
        %v631 = vunpack.c.l.b16 %v411
        %v632 = vunpack.c.h.b16 %v411
        %v633 = vunpack.c.l.b16 %v412
        %v634 = vunpack.c.h.b16 %v412
        %v635 = vunpack.c.l.b16 %v413
        %v636 = vunpack.c.h.b16 %v413
        %v637 = vunpack.c.l.b16 %v414
        %v638 = vunpack.c.h.b16 %v414
        %v639 = vunpack.c.l.b16 %v415
        %v640 = vunpack.c.h.b16 %v415
        %v641 = vunpack.c.l.b16 %v416
        %v642 = vunpack.c.h.b16 %v416
        %v643 = vunpack.c.l.b16 %v417
        %v644 = vunpack.c.h.b16 %v417
        %v645 = vunpack.c.l.b16 %v418
        %v646 = vunpack.c.h.b16 %v418
        %v647 = vunpack.c.l.b16 %v419
        %v648 = vunpack.c.h.b16 %v419
        %v649 = vunpack.c.l.b16 %v420
        %v650 = vunpack.c.h.b16 %v420
        %v651 = vunpack.c.l.b16 %v421
        %v652 = vunpack.c.h.b16 %v421
        %v653 = vunpack.c.l.b16 %v422
        %v654 = vunpack.c.h.b16 %v422
        %v655 = vunpack.c.l.b16 %v423
        %v656 = vunpack.c.h.b16 %v423
        %v657 = vunpack.c.l.b16 %v424
        %v658 = vunpack.c.h.b16 %v424
        %v659 = vunpack.c.l.b16 %v425
        %v660 = vunpack.c.h.b16 %v425
        %v661 = vunpack.c.l.b16 %v426
        %v662 = vunpack.c.h.b16 %v426
        %v663 = vunpack.c.l.b16 %v427
        %v664 = vunpack.c.h.b16 %v427
        %v665 = vunpack.c.l.b16 %v428
        %v666 = vunpack.c.h.b16 %v428
        %v667 = vunpack.c.l.b16 %v429
        %v668 = vunpack.c.h.b16 %v429
        %v669 = vunpack.c.l.b16 %v430
        %v670 = vunpack.c.h.b16 %v430
        %v671 = vunpack.c.l.b16 %v431
        %v672 = vunpack.c.h.b16 %v431
        %v673 = vunpack.c.l.b16 %v432
        %v674 = vunpack.c.h.b16 %v432
        %v675 = vunpack.c.l.b16 %v433
        %v676 = vunpack.c.h.b16 %v433
        %v677 = vunpack.c.l.b16 %v434
        %v678 = vunpack.c.h.b16 %v434
        %v679 = vunpack.c.l.b16 %v435
        %v680 = vunpack.c.h.b16 %v435
        %v681 = vunpack.c.l.b16 %v436
        %v682 = vunpack.c.h.b16 %v436
        %v683 = vpack.c.b16 %v593, %v587
        %v684 = vpack.c.b16 %v594, %v588
        %v685 = vpack.c.b16 %v595, %v589
        %v686 = vpack.c.b16 %v596, %v590
        %v687 = vpack.c.b16 %v597, %v591
        %v688 = vpack.c.b16 %v598, %v592
        %v689 = vpack.c.b16 %v605, %v599
        %v690 = vpack.c.b16 %v606, %v600
        %v691 = vpack.c.b16 %v607, %v601
        %v692 = vpack.c.b16 %v608, %v602
        %v693 = vpack.c.b16 %v609, %v603
        %v694 = vpack.c.b16 %v610, %v604
        %v695 = vpack.c.b16 %v617, %v611
        %v696 = vpack.c.b16 %v618, %v612
        %v697 = vpack.c.b16 %v619, %v613
        %v698 = vpack.c.b16 %v620, %v614
        %v699 = vpack.c.b16 %v621, %v615
        %v700 = vpack.c.b16 %v622, %v616
        %v701 = vpack.c.b16 %v629, %v623
        %v702 = vpack.c.b16 %v630, %v624
        %v703 = vpack.c.b16 %v631, %v625
        %v704 = vpack.c.b16 %v632, %v626
        %v705 = vpack.c.b16 %v633, %v627
        %v706 = vpack.c.b16 %v634, %v628
        %v707 = vpack.c.b16 %v641, %v635
        %v708 = vpack.c.b16 %v642, %v636
        %v709 = vpack.c.b16 %v643, %v637
        %v710 = vpack.c.b16 %v644, %v638
        %v711 = vpack.c.b16 %v645, %v639
        %v712 = vpack.c.b16 %v646, %v640
        %v713 = vpack.c.b16 %v653, %v647
        %v714 = vpack.c.b16 %v654, %v648
        %v715 = vpack.c.b16 %v655, %v649
        %v716 = vpack.c.b16 %v656, %v650
        %v717 = vpack.c.b16 %v657, %v651
        %v718 = vpack.c.b16 %v658, %v652
        %v719 = vpack.c.b16 %v665, %v659
        %v720 = vpack.c.b16 %v666, %v660
        %v721 = vpack.c.b16 %v667, %v661
        %v722 = vpack.c.b16 %v668, %v662
        %v723 = vpack.c.b16 %v669, %v663
        %v724 = vpack.c.b16 %v670, %v664
        %v725 = vpack.c.b16 %v677, %v671
        %v726 = vpack.c.b16 %v678, %v672
        %v727 = vpack.c.b16 %v679, %v673
        %v728 = vpack.c.b16 %v680, %v674
        %v729 = vpack.c.b16 %v681, %v675
        %v730 = vpack.c.b16 %v682, %v676
        %v875 = vunpack.c.l.b16 %v437
        %v876 = vunpack.c.h.b16 %v437
        %v877 = vunpack.c.l.b16 %v438
        %v878 = vunpack.c.h.b16 %v438
        %v879 = vunpack.c.l.b16 %v439
        %v880 = vunpack.c.h.b16 %v439
        %v881 = vunpack.c.l.b16 %v440
        %v882 = vunpack.c.h.b16 %v440
        %v883 = vunpack.c.l.b16 %v441
        %v884 = vunpack.c.h.b16 %v441
        %v885 = vunpack.c.l.b16 %v442
        %v886 = vunpack.c.h.b16 %v442
        %v887 = vunpack.c.l.b16 %v443
        %v888 = vunpack.c.h.b16 %v443
        %v889 = vunpack.c.l.b16 %v444
        %v890 = vunpack.c.h.b16 %v444
        %v891 = vunpack.c.l.b16 %v445
        %v892 = vunpack.c.h.b16 %v445
        %v893 = vunpack.c.l.b16 %v446
        %v894 = vunpack.c.h.b16 %v446
        %v895 = vunpack.c.l.b16 %v447
        %v896 = vunpack.c.h.b16 %v447
        %v897 = vunpack.c.l.b16 %v448
        %v898 = vunpack.c.h.b16 %v448
        %v899 = vunpack.c.l.b16 %v449
        %v900 = vunpack.c.h.b16 %v449
        %v901 = vunpack.c.l.b16 %v450
        %v902 = vunpack.c.h.b16 %v450
        %v903 = vunpack.c.l.b16 %v451
        %v904 = vunpack.c.h.b16 %v451
        %v905 = vunpack.c.l.b16 %v452
        %v906 = vunpack.c.h.b16 %v452
        %v907 = vunpack.c.l.b16 %v453
        %v908 = vunpack.c.h.b16 %v453
        %v909 = vunpack.c.l.b16 %v454
        %v910 = vunpack.c.h.b16 %v454
        %v911 = vunpack.c.l.b16 %v455
        %v912 = vunpack.c.h.b16 %v455
        %v913 = vunpack.c.l.b16 %v456
        %v914 = vunpack.c.h.b16 %v456
        %v915 = vunpack.c.l.b16 %v457
        %v916 = vunpack.c.h.b16 %v457
        %v917 = vunpack.c.l.b16 %v458
        %v918 = vunpack.c.h.b16 %v458
        %v919 = vunpack.c.l.b16 %v459
        %v920 = vunpack.c.h.b16 %v459
        %v921 = vunpack.c.l.b16 %v460
        %v922 = vunpack.c.h.b16 %v460
        %v923 = vunpack.c.l.b16 %v461
        %v924 = vunpack.c.h.b16 %v461
        %v925 = vunpack.c.l.b16 %v462
        %v926 = vunpack.c.h.b16 %v462
        %v927 = vunpack.c.l.b16 %v463
        %v928 = vunpack.c.h.b16 %v463
        %v929 = vunpack.c.l.b16 %v464
        %v930 = vunpack.c.h.b16 %v464
        %v931 = vunpack.c.l.b16 %v465
        %v932 = vunpack.c.h.b16 %v465
        %v933 = vunpack.c.l.b16 %v466
        %v934 = vunpack.c.h.b16 %v466
        %v935 = vunpack.c.l.b16 %v467
        %v936 = vunpack.c.h.b16 %v467
        %v937 = vunpack.c.l.b16 %v468
        %v938 = vunpack.c.h.b16 %v468
        %v939 = vunpack.c.l.b16 %v469
        %v940 = vunpack.c.h.b16 %v469
        %v941 = vunpack.c.l.b16 %v470
        %v942 = vunpack.c.h.b16 %v470
        %v943 = vunpack.c.l.b16 %v471
        %v944 = vunpack.c.h.b16 %v471
        %v945 = vunpack.c.l.b16 %v472
        %v946 = vunpack.c.h.b16 %v472
        %v947 = vunpack.c.l.b16 %v473
        %v948 = vunpack.c.h.b16 %v473
        %v949 = vunpack.c.l.b16 %v474
        %v950 = vunpack.c.h.b16 %v474
        %v951 = vunpack.c.l.b16 %v475
        %v952 = vunpack.c.h.b16 %v475
        %v953 = vunpack.c.l.b16 %v476
        %v954 = vunpack.c.h.b16 %v476
        %v955 = vunpack.c.l.b16 %v477
        %v956 = vunpack.c.h.b16 %v477
        %v957 = vunpack.c.l.b16 %v478
        %v958 = vunpack.c.h.b16 %v478
        %v959 = vunpack.c.l.b16 %v479
        %v960 = vunpack.c.h.b16 %v479
        %v961 = vunpack.c.l.b16 %v480
        %v962 = vunpack.c.h.b16 %v480
        %v963 = vunpack.c.l.b16 %v481
        %v964 = vunpack.c.h.b16 %v481
        %v965 = vunpack.c.l.b16 %v482
        %v966 = vunpack.c.h.b16 %v482
        %v967 = vunpack.c.l.b16 %v483
        %v968 = vunpack.c.h.b16 %v483
        %v969 = vunpack.c.l.b16 %v484
        %v970 = vunpack.c.h.b16 %v484
        %v971 = vunpack.c.l.b16 %v485
        %v972 = vunpack.c.h.b16 %v485
        %v973 = vunpack.c.l.b16 %v486
        %v974 = vunpack.c.h.b16 %v486
        %v975 = vunpack.c.l.b16 %v487
        %v976 = vunpack.c.h.b16 %v487
        %v977 = vunpack.c.l.b16 %v488
        %v978 = vunpack.c.h.b16 %v488
        %v979 = vunpack.c.l.b16 %v489
        %v980 = vunpack.c.h.b16 %v489
        %v981 = vunpack.c.l.b16 %v490
        %v982 = vunpack.c.h.b16 %v490
        %v983 = vunpack.c.l.b16 %v491
        %v984 = vunpack.c.h.b16 %v491
        %v985 = vunpack.c.l.b16 %v492
        %v986 = vunpack.c.h.b16 %v492
        %v987 = vunpack.c.l.b16 %v493
        %v988 = vunpack.c.h.b16 %v493
        %v989 = vunpack.c.l.b16 %v494
        %v990 = vunpack.c.h.b16 %v494
        %v991 = vunpack.c.l.b16 %v495
        %v992 = vunpack.c.h.b16 %v495
        %v993 = vunpack.c.l.b16 %v496
        %v994 = vunpack.c.h.b16 %v496
        %v995 = vunpack.c.l.b16 %v497
        %v996 = vunpack.c.h.b16 %v497
        %v997 = vunpack.c.l.b16 %v498
        %v998 = vunpack.c.h.b16 %v498
        %v999 = vunpack.c.l.b16 %v499
        %v1000 = vunpack.c.h.b16 %v499
        %v1001 = vunpack.c.l.b16 %v500
        %v1002 = vunpack.c.h.b16 %v500
        %v1003 = vunpack.c.l.b16 %v501
        %v1004 = vunpack.c.h.b16 %v501
        %v1005 = vunpack.c.l.b16 %v502
        %v1006 = vunpack.c.h.b16 %v502
        %v1007 = vunpack.c.l.b16 %v503
        %v1008 = vunpack.c.h.b16 %v503
        %v1009 = vunpack.c.l.b16 %v504
        %v1010 = vunpack.c.h.b16 %v504
        %v1011 = vunpack.c.l.b16 %v505
        %v1012 = vunpack.c.h.b16 %v505
        %v1013 = vunpack.c.l.b16 %v506
        %v1014 = vunpack.c.h.b16 %v506
        %v1015 = vunpack.c.l.b16 %v507
        %v1016 = vunpack.c.h.b16 %v507
        %v1017 = vunpack.c.l.b16 %v508
        %v1018 = vunpack.c.h.b16 %v508
        %v1019 = vunpack.c.l.b16 %v509
        %v1020 = vunpack.c.h.b16 %v509
        %v1021 = vunpack.c.l.b16 %v510
        %v1022 = vunpack.c.h.b16 %v510
        %v1023 = vunpack.c.l.b16 %v511
        %v1024 = vunpack.c.h.b16 %v511
        %v1025 = vunpack.c.l.b16 %v512
        %v1026 = vunpack.c.h.b16 %v512
        %v1027 = vunpack.c.l.b16 %v513
        %v1028 = vunpack.c.h.b16 %v513
        %v1029 = vunpack.c.l.b16 %v514
        %v1030 = vunpack.c.h.b16 %v514
        %v1031 = vunpack.c.l.b16 %v515
        %v1032 = vunpack.c.h.b16 %v515
        %v1033 = vunpack.c.l.b16 %v516
        %v1034 = vunpack.c.h.b16 %v516
        %v1035 = vunpack.c.l.b16 %v517
        %v1036 = vunpack.c.h.b16 %v517
        %v1037 = vunpack.c.l.b16 %v518
        %v1038 = vunpack.c.h.b16 %v518
        %v1039 = vunpack.c.l.b16 %v519
        %v1040 = vunpack.c.h.b16 %v519
        %v1041 = vunpack.c.l.b16 %v520
        %v1042 = vunpack.c.h.b16 %v520
        %v1043 = vunpack.c.l.b16 %v521
        %v1044 = vunpack.c.h.b16 %v521
        %v1045 = vunpack.c.l.b16 %v522
        %v1046 = vunpack.c.h.b16 %v522
        %v1047 = vunpack.c.l.b16 %v523
        %v1048 = vunpack.c.h.b16 %v523
        %v1049 = vunpack.c.l.b16 %v524
        %v1050 = vunpack.c.h.b16 %v524
        %v1051 = vunpack.c.l.b16 %v525
        %v1052 = vunpack.c.h.b16 %v525
        %v1053 = vunpack.c.l.b16 %v526
        %v1054 = vunpack.c.h.b16 %v526
        %v1055 = vunpack.c.l.b16 %v527
        %v1056 = vunpack.c.h.b16 %v527
        %v1057 = vunpack.c.l.b16 %v528
        %v1058 = vunpack.c.h.b16 %v528
        %v1059 = vunpack.c.l.b16 %v529
        %v1060 = vunpack.c.h.b16 %v529
        %v1061 = vunpack.c.l.b16 %v530
        %v1062 = vunpack.c.h.b16 %v530
        %v1063 = vunpack.c.l.b16 %v531
        %v1064 = vunpack.c.h.b16 %v531
        %v1065 = vunpack.c.l.b16 %v532
        %v1066 = vunpack.c.h.b16 %v532
        %v1067 = vpack.c.b16 %v877, %v875
        %v1068 = vpack.c.b16 %v878, %v876
        %v1069 = vpack.c.b16 %v881, %v879
        %v1070 = vpack.c.b16 %v882, %v880
        %v1071 = vpack.c.b16 %v885, %v883
        %v1072 = vpack.c.b16 %v886, %v884
        %v1073 = vpack.c.b16 %v889, %v887
        %v1074 = vpack.c.b16 %v890, %v888
        %v1075 = vpack.c.b16 %v893, %v891
        %v1076 = vpack.c.b16 %v894, %v892
        %v1077 = vpack.c.b16 %v897, %v895
        %v1078 = vpack.c.b16 %v898, %v896
        %v1079 = vpack.c.b16 %v901, %v899
        %v1080 = vpack.c.b16 %v902, %v900
        %v1081 = vpack.c.b16 %v905, %v903
        %v1082 = vpack.c.b16 %v906, %v904
        %v1083 = vpack.c.b16 %v909, %v907
        %v1084 = vpack.c.b16 %v910, %v908
        %v1085 = vpack.c.b16 %v913, %v911
        %v1086 = vpack.c.b16 %v914, %v912
        %v1087 = vpack.c.b16 %v917, %v915
        %v1088 = vpack.c.b16 %v918, %v916
        %v1089 = vpack.c.b16 %v921, %v919
        %v1090 = vpack.c.b16 %v922, %v920
        %v1091 = vpack.c.b16 %v925, %v923
        %v1092 = vpack.c.b16 %v926, %v924
        %v1093 = vpack.c.b16 %v929, %v927
        %v1094 = vpack.c.b16 %v930, %v928
        %v1095 = vpack.c.b16 %v933, %v931
        %v1096 = vpack.c.b16 %v934, %v932
        %v1097 = vpack.c.b16 %v937, %v935
        %v1098 = vpack.c.b16 %v938, %v936
        %v1099 = vpack.c.b16 %v941, %v939
        %v1100 = vpack.c.b16 %v942, %v940
        %v1101 = vpack.c.b16 %v945, %v943
        %v1102 = vpack.c.b16 %v946, %v944
        %v1103 = vpack.c.b16 %v949, %v947
        %v1104 = vpack.c.b16 %v950, %v948
        %v1105 = vpack.c.b16 %v953, %v951
        %v1106 = vpack.c.b16 %v954, %v952
        %v1107 = vpack.c.b16 %v957, %v955
        %v1108 = vpack.c.b16 %v958, %v956
        %v1109 = vpack.c.b16 %v961, %v959
        %v1110 = vpack.c.b16 %v962, %v960
        %v1111 = vpack.c.b16 %v965, %v963
        %v1112 = vpack.c.b16 %v966, %v964
        %v1113 = vpack.c.b16 %v969, %v967
        %v1114 = vpack.c.b16 %v970, %v968
        %v1115 = vpack.c.b16 %v973, %v971
        %v1116 = vpack.c.b16 %v974, %v972
        %v1117 = vpack.c.b16 %v977, %v975
        %v1118 = vpack.c.b16 %v978, %v976
        %v1119 = vpack.c.b16 %v981, %v979
        %v1120 = vpack.c.b16 %v982, %v980
        %v1121 = vpack.c.b16 %v985, %v983
        %v1122 = vpack.c.b16 %v986, %v984
        %v1123 = vpack.c.b16 %v989, %v987
        %v1124 = vpack.c.b16 %v990, %v988
        %v1125 = vpack.c.b16 %v993, %v991
        %v1126 = vpack.c.b16 %v994, %v992
        %v1127 = vpack.c.b16 %v997, %v995
        %v1128 = vpack.c.b16 %v998, %v996
        %v1129 = vpack.c.b16 %v1001, %v999
        %v1130 = vpack.c.b16 %v1002, %v1000
        %v1131 = vpack.c.b16 %v1005, %v1003
        %v1132 = vpack.c.b16 %v1006, %v1004
        %v1133 = vpack.c.b16 %v1009, %v1007
        %v1134 = vpack.c.b16 %v1010, %v1008
        %v1135 = vpack.c.b16 %v1013, %v1011
        %v1136 = vpack.c.b16 %v1014, %v1012
        %v1137 = vpack.c.b16 %v1017, %v1015
        %v1138 = vpack.c.b16 %v1018, %v1016
        %v1139 = vpack.c.b16 %v1021, %v1019
        %v1140 = vpack.c.b16 %v1022, %v1020
        %v1141 = vpack.c.b16 %v1025, %v1023
        %v1142 = vpack.c.b16 %v1026, %v1024
        %v1143 = vpack.c.b16 %v1029, %v1027
        %v1144 = vpack.c.b16 %v1030, %v1028
        %v1145 = vpack.c.b16 %v1033, %v1031
        %v1146 = vpack.c.b16 %v1034, %v1032
        %v1147 = vpack.c.b16 %v1037, %v1035
        %v1148 = vpack.c.b16 %v1038, %v1036
        %v1149 = vpack.c.b16 %v1041, %v1039
        %v1150 = vpack.c.b16 %v1042, %v1040
        %v1151 = vpack.c.b16 %v1045, %v1043
        %v1152 = vpack.c.b16 %v1046, %v1044
        %v1153 = vpack.c.b16 %v1049, %v1047
        %v1154 = vpack.c.b16 %v1050, %v1048
        %v1155 = vpack.c.b16 %v1053, %v1051
        %v1156 = vpack.c.b16 %v1054, %v1052
        %v1157 = vpack.c.b16 %v1057, %v1055
        %v1158 = vpack.c.b16 %v1058, %v1056
        %v1159 = vpack.c.b16 %v1061, %v1059
        %v1160 = vpack.c.b16 %v1062, %v1060
        %v1161 = vpack.c.b16 %v1065, %v1063
        %v1162 = vpack.c.b16 %v1066, %v1064
        %1259 = vmatpush.bf16.msra.mxu0 %v1081
        %1260 = vmatpush.bf16.msra.mxu0 %v1079
        %1261 = vmatpush.bf16.msra.mxu0 %v1077
        %1262 = vmatpush.bf16.msra.mxu0 %v1075
        %1263 = vmatpush.bf16.msra.mxu0 %v1073
        %1264 = vmatpush.bf16.msra.mxu0 %v1071
        %1265 = vmatpush.bf16.msra.mxu0 %v1069
        %1266 = vmatpush.bf16.msra.mxu0 %v1067
        %1267 = vmatmul.bf16.gmra.mxu0 %v683
        %v1268 = vpop.f32.mrf.mxu0
        %v1269 = vadd.f32 %v535, %v1268
        %v1270 = vpop.f32.mrf.mxu0
        %v1271 = vadd.f32 %v535, %v1270
        %1272 = vmatmul.bf16.gmra.mxu0 %v689
        %v1273 = vpop.f32.mrf.mxu0
        %v1274 = vadd.f32 %v535, %v1273
        %v1275 = vpop.f32.mrf.mxu0
        %v1276 = vadd.f32 %v535, %v1275
        %1277 = vmatmul.bf16.gmra.mxu0 %v695
        %v1278 = vpop.f32.mrf.mxu0
        %v1279 = vadd.f32 %v535, %v1278
        %v1280 = vpop.f32.mrf.mxu0
        %v1281 = vadd.f32 %v535, %v1280
        %1282 = vmatmul.bf16.gmra.mxu0 %v701
        %v1283 = vpop.f32.mrf.mxu0
        %v1284 = vadd.f32 %v535, %v1283
        %v1285 = vpop.f32.mrf.mxu0
        %v1286 = vadd.f32 %v535, %v1285
        %1287 = vmatmul.bf16.gmra.mxu0 %v707
        %v1288 = vpop.f32.mrf.mxu0
        %v1289 = vadd.f32 %v535, %v1288
        %v1290 = vpop.f32.mrf.mxu0
        %v1291 = vadd.f32 %v535, %v1290
        %1292 = vmatmul.bf16.gmra.mxu0 %v713
        %v1293 = vpop.f32.mrf.mxu0
        %v1294 = vadd.f32 %v535, %v1293
        %v1295 = vpop.f32.mrf.mxu0
        %v1296 = vadd.f32 %v535, %v1295
        %1297 = vmatmul.bf16.gmra.mxu0 %v719
        %v1298 = vpop.f32.mrf.mxu0
        %v1299 = vadd.f32 %v535, %v1298
        %v1300 = vpop.f32.mrf.mxu0
        %v1301 = vadd.f32 %v535, %v1300
        %1302 = vmatmul.bf16.gmra.mxu0 %v725
        %v1303 = vpop.f32.mrf.mxu0
        %v1304 = vadd.f32 %v535, %v1303
        %v1305 = vpop.f32.mrf.mxu0
        %v1306 = vadd.f32 %v535, %v1305
        %1307 = vdwg.mxu0
        %1308 = vmatpush.bf16.msra.mxu0 %v1097
        %1309 = vmatpush.bf16.msra.mxu0 %v1095
        %1310 = vmatpush.bf16.msra.mxu0 %v1093
        %1311 = vmatpush.bf16.msra.mxu0 %v1091
        %1312 = vmatpush.bf16.msra.mxu0 %v1089
        %1313 = vmatpush.bf16.msra.mxu0 %v1087
        %1314 = vmatpush.bf16.msra.mxu0 %v1085
        %1315 = vmatpush.bf16.msra.mxu0 %v1083
        %1316 = vmatmul.bf16.gmra.mxu0 %v684
        %v1317 = vpop.f32.mrf.mxu0
        %v1318 = vadd.f32 %v1269, %v1317
        %v1319 = vpop.f32.mrf.mxu0
        %v1320 = vadd.f32 %v1271, %v1319
        %1321 = vmatmul.bf16.gmra.mxu0 %v690
        %v1322 = vpop.f32.mrf.mxu0
        %v1323 = vadd.f32 %v1274, %v1322
        %v1324 = vpop.f32.mrf.mxu0
        %v1325 = vadd.f32 %v1276, %v1324
        %1326 = vmatmul.bf16.gmra.mxu0 %v696
        %v1327 = vpop.f32.mrf.mxu0
        %v1328 = vadd.f32 %v1279, %v1327
        %v1329 = vpop.f32.mrf.mxu0
        %v1330 = vadd.f32 %v1281, %v1329
        %1331 = vmatmul.bf16.gmra.mxu0 %v702
        %v1332 = vpop.f32.mrf.mxu0
        %v1333 = vadd.f32 %v1284, %v1332
        %v1334 = vpop.f32.mrf.mxu0
        %v1335 = vadd.f32 %v1286, %v1334
        %1336 = vmatmul.bf16.gmra.mxu0 %v708
        %v1337 = vpop.f32.mrf.mxu0
        %v1338 = vadd.f32 %v1289, %v1337
        %v1339 = vpop.f32.mrf.mxu0
        %v1340 = vadd.f32 %v1291, %v1339
        %1341 = vmatmul.bf16.gmra.mxu0 %v714
        %v1342 = vpop.f32.mrf.mxu0
        %v1343 = vadd.f32 %v1294, %v1342
        %v1344 = vpop.f32.mrf.mxu0
        %v1345 = vadd.f32 %v1296, %v1344
        %1346 = vmatmul.bf16.gmra.mxu0 %v720
        %v1347 = vpop.f32.mrf.mxu0
        %v1348 = vadd.f32 %v1299, %v1347
        %v1349 = vpop.f32.mrf.mxu0
        %v1350 = vadd.f32 %v1301, %v1349
        %1351 = vmatmul.bf16.gmra.mxu0 %v726
        %v1352 = vpop.f32.mrf.mxu0
        %v1353 = vadd.f32 %v1304, %v1352
        %v1354 = vpop.f32.mrf.mxu0
        %v1355 = vadd.f32 %v1306, %v1354
        %1356 = vdwg.mxu0
        %1357 = vmatpush.bf16.msra.mxu0 %v1113
        %1358 = vmatpush.bf16.msra.mxu0 %v1111
        %1359 = vmatpush.bf16.msra.mxu0 %v1109
        %1360 = vmatpush.bf16.msra.mxu0 %v1107
        %1361 = vmatpush.bf16.msra.mxu0 %v1105
        %1362 = vmatpush.bf16.msra.mxu0 %v1103
        %1363 = vmatpush.bf16.msra.mxu0 %v1101
        %1364 = vmatpush.bf16.msra.mxu0 %v1099
        %1365 = vmatmul.bf16.gmra.mxu0 %v685
        %v1366 = vpop.f32.mrf.mxu0
        %v1367 = vadd.f32 %v1318, %v1366
        %v1368 = vpop.f32.mrf.mxu0
        %v1369 = vadd.f32 %v1320, %v1368
        %1370 = vmatmul.bf16.gmra.mxu0 %v691
        %v1371 = vpop.f32.mrf.mxu0
        %v1372 = vadd.f32 %v1323, %v1371
        %v1373 = vpop.f32.mrf.mxu0
        %v1374 = vadd.f32 %v1325, %v1373
        %1375 = vmatmul.bf16.gmra.mxu0 %v697
        %v1376 = vpop.f32.mrf.mxu0
        %v1377 = vadd.f32 %v1328, %v1376
        %v1378 = vpop.f32.mrf.mxu0
        %v1379 = vadd.f32 %v1330, %v1378
        %1380 = vmatmul.bf16.gmra.mxu0 %v703
        %v1381 = vpop.f32.mrf.mxu0
        %v1382 = vadd.f32 %v1333, %v1381
        %v1383 = vpop.f32.mrf.mxu0
        %v1384 = vadd.f32 %v1335, %v1383
        %1385 = vmatmul.bf16.gmra.mxu0 %v709
        %v1386 = vpop.f32.mrf.mxu0
        %v1387 = vadd.f32 %v1338, %v1386
        %v1388 = vpop.f32.mrf.mxu0
        %v1389 = vadd.f32 %v1340, %v1388
        %1390 = vmatmul.bf16.gmra.mxu0 %v715
        %v1391 = vpop.f32.mrf.mxu0
        %v1392 = vadd.f32 %v1343, %v1391
        %v1393 = vpop.f32.mrf.mxu0
        %v1394 = vadd.f32 %v1345, %v1393
        %1395 = vmatmul.bf16.gmra.mxu0 %v721
        %v1396 = vpop.f32.mrf.mxu0
        %v1397 = vadd.f32 %v1348, %v1396
        %v1398 = vpop.f32.mrf.mxu0
        %v1399 = vadd.f32 %v1350, %v1398
        %1400 = vmatmul.bf16.gmra.mxu0 %v727
        %v1401 = vpop.f32.mrf.mxu0
        %v1402 = vadd.f32 %v1353, %v1401
        %v1403 = vpop.f32.mrf.mxu0
        %v1404 = vadd.f32 %v1355, %v1403
        %1405 = vdwg.mxu0
        %1406 = vmatpush.bf16.msra.mxu0 %v1129
        %1407 = vmatpush.bf16.msra.mxu0 %v1127
        %1408 = vmatpush.bf16.msra.mxu0 %v1125
        %1409 = vmatpush.bf16.msra.mxu0 %v1123
        %1410 = vmatpush.bf16.msra.mxu0 %v1121
        %1411 = vmatpush.bf16.msra.mxu0 %v1119
        %1412 = vmatpush.bf16.msra.mxu0 %v1117
        %1413 = vmatpush.bf16.msra.mxu0 %v1115
        %1414 = vmatmul.bf16.gmra.mxu0 %v686
        %v1415 = vpop.f32.mrf.mxu0
        %v1416 = vadd.f32 %v1367, %v1415
        %v1417 = vpop.f32.mrf.mxu0
        %v1418 = vadd.f32 %v1369, %v1417
        %1419 = vmatmul.bf16.gmra.mxu0 %v692
        %v1420 = vpop.f32.mrf.mxu0
        %v1421 = vadd.f32 %v1372, %v1420
        %v1422 = vpop.f32.mrf.mxu0
        %v1423 = vadd.f32 %v1374, %v1422
        %1424 = vmatmul.bf16.gmra.mxu0 %v698
        %v1425 = vpop.f32.mrf.mxu0
        %v1426 = vadd.f32 %v1377, %v1425
        %v1427 = vpop.f32.mrf.mxu0
        %v1428 = vadd.f32 %v1379, %v1427
        %1429 = vmatmul.bf16.gmra.mxu0 %v704
        %v1430 = vpop.f32.mrf.mxu0
        %v1431 = vadd.f32 %v1382, %v1430
        %v1432 = vpop.f32.mrf.mxu0
        %v1433 = vadd.f32 %v1384, %v1432
        %1434 = vmatmul.bf16.gmra.mxu0 %v710
        %v1435 = vpop.f32.mrf.mxu0
        %v1436 = vadd.f32 %v1387, %v1435
        %v1437 = vpop.f32.mrf.mxu0
        %v1438 = vadd.f32 %v1389, %v1437
        %1439 = vmatmul.bf16.gmra.mxu0 %v716
        %v1440 = vpop.f32.mrf.mxu0
        %v1441 = vadd.f32 %v1392, %v1440
        %v1442 = vpop.f32.mrf.mxu0
        %v1443 = vadd.f32 %v1394, %v1442
        %1444 = vmatmul.bf16.gmra.mxu0 %v722
        %v1445 = vpop.f32.mrf.mxu0
        %v1446 = vadd.f32 %v1397, %v1445
        %v1447 = vpop.f32.mrf.mxu0
        %v1448 = vadd.f32 %v1399, %v1447
        %1449 = vmatmul.bf16.gmra.mxu0 %v728
        %v1450 = vpop.f32.mrf.mxu0
        %v1451 = vadd.f32 %v1402, %v1450
        %v1452 = vpop.f32.mrf.mxu0
        %v1453 = vadd.f32 %v1404, %v1452
        %1454 = vdwg.mxu0
        %1455 = vmatpush.bf16.msra.mxu0 %v1145
        %1456 = vmatpush.bf16.msra.mxu0 %v1143
        %1457 = vmatpush.bf16.msra.mxu0 %v1141
        %1458 = vmatpush.bf16.msra.mxu0 %v1139
        %1459 = vmatpush.bf16.msra.mxu0 %v1137
        %1460 = vmatpush.bf16.msra.mxu0 %v1135
        %1461 = vmatpush.bf16.msra.mxu0 %v1133
        %1462 = vmatpush.bf16.msra.mxu0 %v1131
        %1463 = vmatmul.bf16.gmra.mxu0 %v687
        %v1464 = vpop.f32.mrf.mxu0
        %v1465 = vadd.f32 %v1416, %v1464
        %v1466 = vpop.f32.mrf.mxu0
        %v1467 = vadd.f32 %v1418, %v1466
        %1468 = vmatmul.bf16.gmra.mxu0 %v693
        %v1469 = vpop.f32.mrf.mxu0
        %v1470 = vadd.f32 %v1421, %v1469
        %v1471 = vpop.f32.mrf.mxu0
        %v1472 = vadd.f32 %v1423, %v1471
        %1473 = vmatmul.bf16.gmra.mxu0 %v699
        %v1474 = vpop.f32.mrf.mxu0
        %v1475 = vadd.f32 %v1426, %v1474
        %v1476 = vpop.f32.mrf.mxu0
        %v1477 = vadd.f32 %v1428, %v1476
        %1478 = vmatmul.bf16.gmra.mxu0 %v705
        %v1479 = vpop.f32.mrf.mxu0
        %v1480 = vadd.f32 %v1431, %v1479
        %v1481 = vpop.f32.mrf.mxu0
        %v1482 = vadd.f32 %v1433, %v1481
        %1483 = vmatmul.bf16.gmra.mxu0 %v711
        %v1484 = vpop.f32.mrf.mxu0
        %v1485 = vadd.f32 %v1436, %v1484
        %v1486 = vpop.f32.mrf.mxu0
        %v1487 = vadd.f32 %v1438, %v1486
        %1488 = vmatmul.bf16.gmra.mxu0 %v717
        %v1489 = vpop.f32.mrf.mxu0
        %v1490 = vadd.f32 %v1441, %v1489
        %v1491 = vpop.f32.mrf.mxu0
        %v1492 = vadd.f32 %v1443, %v1491
        %1493 = vmatmul.bf16.gmra.mxu0 %v723
        %v1494 = vpop.f32.mrf.mxu0
        %v1495 = vadd.f32 %v1446, %v1494
        %v1496 = vpop.f32.mrf.mxu0
        %v1497 = vadd.f32 %v1448, %v1496
        %1498 = vmatmul.bf16.gmra.mxu0 %v729
        %v1499 = vpop.f32.mrf.mxu0
        %v1500 = vadd.f32 %v1451, %v1499
        %v1501 = vpop.f32.mrf.mxu0
        %v1502 = vadd.f32 %v1453, %v1501
        %1503 = vdwg.mxu0
        %1504 = vmatpush.bf16.msra.mxu0 %v1161
        %1505 = vmatpush.bf16.msra.mxu0 %v1159
        %1506 = vmatpush.bf16.msra.mxu0 %v1157
        %1507 = vmatpush.bf16.msra.mxu0 %v1155
        %1508 = vmatpush.bf16.msra.mxu0 %v1153
        %1509 = vmatpush.bf16.msra.mxu0 %v1151
        %1510 = vmatpush.bf16.msra.mxu0 %v1149
        %1511 = vmatpush.bf16.msra.mxu0 %v1147
        %1512 = vmatmul.bf16.gmra.mxu0 %v688
        %v1513 = vpop.f32.mrf.mxu0
        %v1514 = vadd.f32 %v1465, %v1513
        %v1515 = vpop.f32.mrf.mxu0
        %v1516 = vadd.f32 %v1467, %v1515
        %1517 = vmatmul.bf16.gmra.mxu0 %v694
        %v1518 = vpop.f32.mrf.mxu0
        %v1519 = vadd.f32 %v1470, %v1518
        %v1520 = vpop.f32.mrf.mxu0
        %v1521 = vadd.f32 %v1472, %v1520
        %1522 = vmatmul.bf16.gmra.mxu0 %v700
        %v1523 = vpop.f32.mrf.mxu0
        %v1524 = vadd.f32 %v1475, %v1523
        %v1525 = vpop.f32.mrf.mxu0
        %v1526 = vadd.f32 %v1477, %v1525
        %1527 = vmatmul.bf16.gmra.mxu0 %v706
        %v1528 = vpop.f32.mrf.mxu0
        %v1529 = vadd.f32 %v1480, %v1528
        %v1530 = vpop.f32.mrf.mxu0
        %v1531 = vadd.f32 %v1482, %v1530
        %1532 = vmatmul.bf16.gmra.mxu0 %v712
        %v1533 = vpop.f32.mrf.mxu0
        %v1534 = vadd.f32 %v1485, %v1533
        %v1535 = vpop.f32.mrf.mxu0
        %v1536 = vadd.f32 %v1487, %v1535
        %1537 = vmatmul.bf16.gmra.mxu0 %v718
        %v1538 = vpop.f32.mrf.mxu0
        %v1539 = vadd.f32 %v1490, %v1538
        %v1540 = vpop.f32.mrf.mxu0
        %v1541 = vadd.f32 %v1492, %v1540
        %1542 = vmatmul.bf16.gmra.mxu0 %v724
        %v1543 = vpop.f32.mrf.mxu0
        %v1544 = vadd.f32 %v1495, %v1543
        %v1545 = vpop.f32.mrf.mxu0
        %v1546 = vadd.f32 %v1497, %v1545
        %1547 = vmatmul.bf16.gmra.mxu0 %v730
        %v1548 = vpop.f32.mrf.mxu0
        %v1549 = vadd.f32 %v1500, %v1548
        %v1550 = vpop.f32.mrf.mxu0
        %v1551 = vadd.f32 %v1502, %v1550
        %1552 = vdwg.mxu0
        %1553 = vmatpush.bf16.msra.mxu0 %v1082
        %1554 = vmatpush.bf16.msra.mxu0 %v1080
        %1555 = vmatpush.bf16.msra.mxu0 %v1078
        %1556 = vmatpush.bf16.msra.mxu0 %v1076
        %1557 = vmatpush.bf16.msra.mxu0 %v1074
        %1558 = vmatpush.bf16.msra.mxu0 %v1072
        %1559 = vmatpush.bf16.msra.mxu0 %v1070
        %1560 = vmatpush.bf16.msra.mxu0 %v1068
        %1561 = vmatmul.bf16.gmra.mxu0 %v683
        %v1562 = vpop.f32.mrf.mxu0
        %v1563 = vadd.f32 %v536, %v1562
        %v1564 = vpop.f32.mrf.mxu0
        %v1565 = vadd.f32 %v536, %v1564
        %1566 = vmatmul.bf16.gmra.mxu0 %v689
        %v1567 = vpop.f32.mrf.mxu0
        %v1568 = vadd.f32 %v536, %v1567
        %v1569 = vpop.f32.mrf.mxu0
        %v1570 = vadd.f32 %v536, %v1569
        %1571 = vmatmul.bf16.gmra.mxu0 %v695
        %v1572 = vpop.f32.mrf.mxu0
        %v1573 = vadd.f32 %v536, %v1572
        %v1574 = vpop.f32.mrf.mxu0
        %v1575 = vadd.f32 %v536, %v1574
        %1576 = vmatmul.bf16.gmra.mxu0 %v701
        %v1577 = vpop.f32.mrf.mxu0
        %v1578 = vadd.f32 %v536, %v1577
        %v1579 = vpop.f32.mrf.mxu0
        %v1580 = vadd.f32 %v536, %v1579
        %1581 = vmatmul.bf16.gmra.mxu0 %v707
        %v1582 = vpop.f32.mrf.mxu0
        %v1583 = vadd.f32 %v536, %v1582
        %v1584 = vpop.f32.mrf.mxu0
        %v1585 = vadd.f32 %v536, %v1584
        %1586 = vmatmul.bf16.gmra.mxu0 %v713
        %v1587 = vpop.f32.mrf.mxu0
        %v1588 = vadd.f32 %v536, %v1587
        %v1589 = vpop.f32.mrf.mxu0
        %v1590 = vadd.f32 %v536, %v1589
        %1591 = vmatmul.bf16.gmra.mxu0 %v719
        %v1592 = vpop.f32.mrf.mxu0
        %v1593 = vadd.f32 %v536, %v1592
        %v1594 = vpop.f32.mrf.mxu0
        %v1595 = vadd.f32 %v536, %v1594
        %1596 = vmatmul.bf16.gmra.mxu0 %v725
        %v1597 = vpop.f32.mrf.mxu0
        %v1598 = vadd.f32 %v536, %v1597
        %v1599 = vpop.f32.mrf.mxu0
        %v1600 = vadd.f32 %v536, %v1599
        %1601 = vdwg.mxu0
        %1602 = vmatpush.bf16.msra.mxu0 %v1098
        %1603 = vmatpush.bf16.msra.mxu0 %v1096
        %1604 = vmatpush.bf16.msra.mxu0 %v1094
        %1605 = vmatpush.bf16.msra.mxu0 %v1092
        %1606 = vmatpush.bf16.msra.mxu0 %v1090
        %1607 = vmatpush.bf16.msra.mxu0 %v1088
        %1608 = vmatpush.bf16.msra.mxu0 %v1086
        %1609 = vmatpush.bf16.msra.mxu0 %v1084
        %1610 = vmatmul.bf16.gmra.mxu0 %v684
        %v1611 = vpop.f32.mrf.mxu0
        %v1612 = vadd.f32 %v1563, %v1611
        %v1613 = vpop.f32.mrf.mxu0
        %v1614 = vadd.f32 %v1565, %v1613
        %1615 = vmatmul.bf16.gmra.mxu0 %v690
        %v1616 = vpop.f32.mrf.mxu0
        %v1617 = vadd.f32 %v1568, %v1616
        %v1618 = vpop.f32.mrf.mxu0
        %v1619 = vadd.f32 %v1570, %v1618
        %1620 = vmatmul.bf16.gmra.mxu0 %v696
        %v1621 = vpop.f32.mrf.mxu0
        %v1622 = vadd.f32 %v1573, %v1621
        %v1623 = vpop.f32.mrf.mxu0
        %v1624 = vadd.f32 %v1575, %v1623
        %1625 = vmatmul.bf16.gmra.mxu0 %v702
        %v1626 = vpop.f32.mrf.mxu0
        %v1627 = vadd.f32 %v1578, %v1626
        %v1628 = vpop.f32.mrf.mxu0
        %v1629 = vadd.f32 %v1580, %v1628
        %1630 = vmatmul.bf16.gmra.mxu0 %v708
        %v1631 = vpop.f32.mrf.mxu0
        %v1632 = vadd.f32 %v1583, %v1631
        %v1633 = vpop.f32.mrf.mxu0
        %v1634 = vadd.f32 %v1585, %v1633
        %1635 = vmatmul.bf16.gmra.mxu0 %v714
        %v1636 = vpop.f32.mrf.mxu0
        %v1637 = vadd.f32 %v1588, %v1636
        %v1638 = vpop.f32.mrf.mxu0
        %v1639 = vadd.f32 %v1590, %v1638
        %1640 = vmatmul.bf16.gmra.mxu0 %v720
        %v1641 = vpop.f32.mrf.mxu0
        %v1642 = vadd.f32 %v1593, %v1641
        %v1643 = vpop.f32.mrf.mxu0
        %v1644 = vadd.f32 %v1595, %v1643
        %1645 = vmatmul.bf16.gmra.mxu0 %v726
        %v1646 = vpop.f32.mrf.mxu0
        %v1647 = vadd.f32 %v1598, %v1646
        %v1648 = vpop.f32.mrf.mxu0
        %v1649 = vadd.f32 %v1600, %v1648
        %1650 = vdwg.mxu0
        %1651 = vmatpush.bf16.msra.mxu0 %v1114
        %1652 = vmatpush.bf16.msra.mxu0 %v1112
        %1653 = vmatpush.bf16.msra.mxu0 %v1110
        %1654 = vmatpush.bf16.msra.mxu0 %v1108
        %1655 = vmatpush.bf16.msra.mxu0 %v1106
        %1656 = vmatpush.bf16.msra.mxu0 %v1104
        %1657 = vmatpush.bf16.msra.mxu0 %v1102
        %1658 = vmatpush.bf16.msra.mxu0 %v1100
        %1659 = vmatmul.bf16.gmra.mxu0 %v685
        %v1660 = vpop.f32.mrf.mxu0
        %v1661 = vadd.f32 %v1612, %v1660
        %v1662 = vpop.f32.mrf.mxu0
        %v1663 = vadd.f32 %v1614, %v1662
        %1664 = vmatmul.bf16.gmra.mxu0 %v691
        %v1665 = vpop.f32.mrf.mxu0
        %v1666 = vadd.f32 %v1617, %v1665
        %v1667 = vpop.f32.mrf.mxu0
        %v1668 = vadd.f32 %v1619, %v1667
        %1669 = vmatmul.bf16.gmra.mxu0 %v697
        %v1670 = vpop.f32.mrf.mxu0
        %v1671 = vadd.f32 %v1622, %v1670
        %v1672 = vpop.f32.mrf.mxu0
        %v1673 = vadd.f32 %v1624, %v1672
        %1674 = vmatmul.bf16.gmra.mxu0 %v703
        %v1675 = vpop.f32.mrf.mxu0
        %v1676 = vadd.f32 %v1627, %v1675
        %v1677 = vpop.f32.mrf.mxu0
        %v1678 = vadd.f32 %v1629, %v1677
        %1679 = vmatmul.bf16.gmra.mxu0 %v709
        %v1680 = vpop.f32.mrf.mxu0
        %v1681 = vadd.f32 %v1632, %v1680
        %v1682 = vpop.f32.mrf.mxu0
        %v1683 = vadd.f32 %v1634, %v1682
        %1684 = vmatmul.bf16.gmra.mxu0 %v715
        %v1685 = vpop.f32.mrf.mxu0
        %v1686 = vadd.f32 %v1637, %v1685
        %v1687 = vpop.f32.mrf.mxu0
        %v1688 = vadd.f32 %v1639, %v1687
        %1689 = vmatmul.bf16.gmra.mxu0 %v721
        %v1690 = vpop.f32.mrf.mxu0
        %v1691 = vadd.f32 %v1642, %v1690
        %v1692 = vpop.f32.mrf.mxu0
        %v1693 = vadd.f32 %v1644, %v1692
        %1694 = vmatmul.bf16.gmra.mxu0 %v727
        %v1695 = vpop.f32.mrf.mxu0
        %v1696 = vadd.f32 %v1647, %v1695
        %v1697 = vpop.f32.mrf.mxu0
        %v1698 = vadd.f32 %v1649, %v1697
        %1699 = vdwg.mxu0
        %1700 = vmatpush.bf16.msra.mxu0 %v1130
        %1701 = vmatpush.bf16.msra.mxu0 %v1128
        %1702 = vmatpush.bf16.msra.mxu0 %v1126
        %1703 = vmatpush.bf16.msra.mxu0 %v1124
        %1704 = vmatpush.bf16.msra.mxu0 %v1122
        %1705 = vmatpush.bf16.msra.mxu0 %v1120
        %1706 = vmatpush.bf16.msra.mxu0 %v1118
        %1707 = vmatpush.bf16.msra.mxu0 %v1116
        %1708 = vmatmul.bf16.gmra.mxu0 %v686
        %v1709 = vpop.f32.mrf.mxu0
        %v1710 = vadd.f32 %v1661, %v1709
        %v1711 = vpop.f32.mrf.mxu0
        %v1712 = vadd.f32 %v1663, %v1711
        %1713 = vmatmul.bf16.gmra.mxu0 %v692
        %v1714 = vpop.f32.mrf.mxu0
        %v1715 = vadd.f32 %v1666, %v1714
        %v1716 = vpop.f32.mrf.mxu0
        %v1717 = vadd.f32 %v1668, %v1716
        %1718 = vmatmul.bf16.gmra.mxu0 %v698
        %v1719 = vpop.f32.mrf.mxu0
        %v1720 = vadd.f32 %v1671, %v1719
        %v1721 = vpop.f32.mrf.mxu0
        %v1722 = vadd.f32 %v1673, %v1721
        %1723 = vmatmul.bf16.gmra.mxu0 %v704
        %v1724 = vpop.f32.mrf.mxu0
        %v1725 = vadd.f32 %v1676, %v1724
        %v1726 = vpop.f32.mrf.mxu0
        %v1727 = vadd.f32 %v1678, %v1726
        %1728 = vmatmul.bf16.gmra.mxu0 %v710
        %v1729 = vpop.f32.mrf.mxu0
        %v1730 = vadd.f32 %v1681, %v1729
        %v1731 = vpop.f32.mrf.mxu0
        %v1732 = vadd.f32 %v1683, %v1731
        %1733 = vmatmul.bf16.gmra.mxu0 %v716
        %v1734 = vpop.f32.mrf.mxu0
        %v1735 = vadd.f32 %v1686, %v1734
        %v1736 = vpop.f32.mrf.mxu0
        %v1737 = vadd.f32 %v1688, %v1736
        %1738 = vmatmul.bf16.gmra.mxu0 %v722
        %v1739 = vpop.f32.mrf.mxu0
        %v1740 = vadd.f32 %v1691, %v1739
        %v1741 = vpop.f32.mrf.mxu0
        %v1742 = vadd.f32 %v1693, %v1741
        %1743 = vmatmul.bf16.gmra.mxu0 %v728
        %v1744 = vpop.f32.mrf.mxu0
        %v1745 = vadd.f32 %v1696, %v1744
        %v1746 = vpop.f32.mrf.mxu0
        %v1747 = vadd.f32 %v1698, %v1746
        %1748 = vdwg.mxu0
        %1749 = vmatpush.bf16.msra.mxu0 %v1146
        %1750 = vmatpush.bf16.msra.mxu0 %v1144
        %1751 = vmatpush.bf16.msra.mxu0 %v1142
        %1752 = vmatpush.bf16.msra.mxu0 %v1140
        %1753 = vmatpush.bf16.msra.mxu0 %v1138
        %1754 = vmatpush.bf16.msra.mxu0 %v1136
        %1755 = vmatpush.bf16.msra.mxu0 %v1134
        %1756 = vmatpush.bf16.msra.mxu0 %v1132
        %1757 = vmatmul.bf16.gmra.mxu0 %v687
        %v1758 = vpop.f32.mrf.mxu0
        %v1759 = vadd.f32 %v1710, %v1758
        %v1760 = vpop.f32.mrf.mxu0
        %v1761 = vadd.f32 %v1712, %v1760
        %1762 = vmatmul.bf16.gmra.mxu0 %v693
        %v1763 = vpop.f32.mrf.mxu0
        %v1764 = vadd.f32 %v1715, %v1763
        %v1765 = vpop.f32.mrf.mxu0
        %v1766 = vadd.f32 %v1717, %v1765
        %1767 = vmatmul.bf16.gmra.mxu0 %v699
        %v1768 = vpop.f32.mrf.mxu0
        %v1769 = vadd.f32 %v1720, %v1768
        %v1770 = vpop.f32.mrf.mxu0
        %v1771 = vadd.f32 %v1722, %v1770
        %1772 = vmatmul.bf16.gmra.mxu0 %v705
        %v1773 = vpop.f32.mrf.mxu0
        %v1774 = vadd.f32 %v1725, %v1773
        %v1775 = vpop.f32.mrf.mxu0
        %v1776 = vadd.f32 %v1727, %v1775
        %1777 = vmatmul.bf16.gmra.mxu0 %v711
        %v1778 = vpop.f32.mrf.mxu0
        %v1779 = vadd.f32 %v1730, %v1778
        %v1780 = vpop.f32.mrf.mxu0
        %v1781 = vadd.f32 %v1732, %v1780
        %1782 = vmatmul.bf16.gmra.mxu0 %v717
        %v1783 = vpop.f32.mrf.mxu0
        %v1784 = vadd.f32 %v1735, %v1783
        %v1785 = vpop.f32.mrf.mxu0
        %v1786 = vadd.f32 %v1737, %v1785
        %1787 = vmatmul.bf16.gmra.mxu0 %v723
        %v1788 = vpop.f32.mrf.mxu0
        %v1789 = vadd.f32 %v1740, %v1788
        %v1790 = vpop.f32.mrf.mxu0
        %v1791 = vadd.f32 %v1742, %v1790
        %1792 = vmatmul.bf16.gmra.mxu0 %v729
        %v1793 = vpop.f32.mrf.mxu0
        %v1794 = vadd.f32 %v1745, %v1793
        %v1795 = vpop.f32.mrf.mxu0
        %v1796 = vadd.f32 %v1747, %v1795
        %1797 = vdwg.mxu0
        %1798 = vmatpush.bf16.msra.mxu0 %v1162
        %1799 = vmatpush.bf16.msra.mxu0 %v1160
        %1800 = vmatpush.bf16.msra.mxu0 %v1158
        %1801 = vmatpush.bf16.msra.mxu0 %v1156
        %1802 = vmatpush.bf16.msra.mxu0 %v1154
        %1803 = vmatpush.bf16.msra.mxu0 %v1152
        %1804 = vmatpush.bf16.msra.mxu0 %v1150
        %1805 = vmatpush.bf16.msra.mxu0 %v1148
        %1806 = vmatmul.bf16.gmra.mxu0 %v688
        %v1807 = vpop.f32.mrf.mxu0
        %v1808 = vadd.f32 %v1759, %v1807
        %v1809 = vpop.f32.mrf.mxu0
        %v1810 = vadd.f32 %v1761, %v1809
        %1811 = vmatmul.bf16.gmra.mxu0 %v694
        %v1812 = vpop.f32.mrf.mxu0
        %v1813 = vadd.f32 %v1764, %v1812
        %v1814 = vpop.f32.mrf.mxu0
        %v1815 = vadd.f32 %v1766, %v1814
        %1816 = vmatmul.bf16.gmra.mxu0 %v700
        %v1817 = vpop.f32.mrf.mxu0
        %v1818 = vadd.f32 %v1769, %v1817
        %v1819 = vpop.f32.mrf.mxu0
        %v1820 = vadd.f32 %v1771, %v1819
        %1821 = vmatmul.bf16.gmra.mxu0 %v706
        %v1822 = vpop.f32.mrf.mxu0
        %v1823 = vadd.f32 %v1774, %v1822
        %v1824 = vpop.f32.mrf.mxu0
        %v1825 = vadd.f32 %v1776, %v1824
        %1826 = vmatmul.bf16.gmra.mxu0 %v712
        %v1827 = vpop.f32.mrf.mxu0
        %v1828 = vadd.f32 %v1779, %v1827
        %v1829 = vpop.f32.mrf.mxu0
        %v1830 = vadd.f32 %v1781, %v1829
        %1831 = vmatmul.bf16.gmra.mxu0 %v718
        %v1832 = vpop.f32.mrf.mxu0
        %v1833 = vadd.f32 %v1784, %v1832
        %v1834 = vpop.f32.mrf.mxu0
        %v1835 = vadd.f32 %v1786, %v1834
        %1836 = vmatmul.bf16.gmra.mxu0 %v724
        %v1837 = vpop.f32.mrf.mxu0
        %v1838 = vadd.f32 %v1789, %v1837
        %v1839 = vpop.f32.mrf.mxu0
        %v1840 = vadd.f32 %v1791, %v1839
        %1841 = vmatmul.bf16.gmra.mxu0 %v730
        %v1842 = vpop.f32.mrf.mxu0
        %v1843 = vadd.f32 %v1794, %v1842
        %v1844 = vpop.f32.mrf.mxu0
        %v1845 = vadd.f32 %v1796, %v1844
        %1846 = vdwg.mxu0
        %v1847 = vmax.f32 %v1514, 0.0
        %v1848 = vmax.f32 %v1808, 0.0
        %v1849 = vmax.f32 %v1516, 0.0
        %v1850 = vmax.f32 %v1810, 0.0
        %v1851 = vmax.f32 %v1519, 0.0
        %v1852 = vmax.f32 %v1813, 0.0
        %v1853 = vmax.f32 %v1521, 0.0
        %v1854 = vmax.f32 %v1815, 0.0
        %v1855 = vmax.f32 %v1524, 0.0
        %v1856 = vmax.f32 %v1818, 0.0
        %v1857 = vmax.f32 %v1526, 0.0
        %v1858 = vmax.f32 %v1820, 0.0
        %v1859 = vmax.f32 %v1529, 0.0
        %v1860 = vmax.f32 %v1823, 0.0
        %v1861 = vmax.f32 %v1531, 0.0
        %v1862 = vmax.f32 %v1825, 0.0
        %v1863 = vmax.f32 %v1534, 0.0
        %v1864 = vmax.f32 %v1828, 0.0
        %v1865 = vmax.f32 %v1536, 0.0
        %v1866 = vmax.f32 %v1830, 0.0
        %v1867 = vmax.f32 %v1539, 0.0
        %v1868 = vmax.f32 %v1833, 0.0
        %v1869 = vmax.f32 %v1541, 0.0
        %v1870 = vmax.f32 %v1835, 0.0
        %v1871 = vmax.f32 %v1544, 0.0
        %v1872 = vmax.f32 %v1838, 0.0
        %v1873 = vmax.f32 %v1546, 0.0
        %v1874 = vmax.f32 %v1840, 0.0
        %v1875 = vmax.f32 %v1549, 0.0
        %v1876 = vmax.f32 %v1843, 0.0
        %v1877 = vmax.f32 %v1551, 0.0
        %v1878 = vmax.f32 %v1845, 0.0
        %v1879 = vpack.c.bf16 %v1849, %v1847
        %v1880 = vpack.c.bf16 %v1850, %v1848
        %v1881 = vpack.c.bf16 %v1853, %v1851
        %v1882 = vpack.c.bf16 %v1854, %v1852
        %v1883 = vpack.c.bf16 %v1857, %v1855
        %v1884 = vpack.c.bf16 %v1858, %v1856
        %v1885 = vpack.c.bf16 %v1861, %v1859
        %v1886 = vpack.c.bf16 %v1862, %v1860
        %v1887 = vpack.c.bf16 %v1865, %v1863
        %v1888 = vpack.c.bf16 %v1866, %v1864
        %v1889 = vpack.c.bf16 %v1869, %v1867
        %v1890 = vpack.c.bf16 %v1870, %v1868
        %v1891 = vpack.c.bf16 %v1873, %v1871
        %v1892 = vpack.c.bf16 %v1874, %v1872
        %v1893 = vpack.c.bf16 %v1877, %v1875
        %v1894 = vpack.c.bf16 %v1878, %v1876
        %v1895 = vld [vmem:[#allocation8] sm:$0xf]
        %v1896 = vld [vmem:[#allocation8 + $0x4] sm:$0xf]
        %v1897 = vld [vmem:[#allocation8 + $0x8] sm:$0xf]
        %v1898 = vld [vmem:[#allocation8 + $0xc] sm:$0xf]
        %v1899 = vld [vmem:[#allocation8 + $0x10] sm:$0xf]
        %v1900 = vld [vmem:[#allocation8 + $0x14] sm:$0xf]
        %v1901 = vld [vmem:[#allocation8 + $0x18] sm:$0xf]
        %v1902 = vld [vmem:[#allocation8 + $0x1c] sm:$0xf]
        %v1903 = vld [vmem:[#allocation8 + $0x20] sm:$0xf]
        %v1904 = vld [vmem:[#allocation8 + $0x24] sm:$0xf]
        %v1905 = vld [vmem:[#allocation8 + $0x28] sm:$0xf]
        %v1906 = vld [vmem:[#allocation8 + $0x2c] sm:$0xf]
        %v1907 = vld [vmem:[#allocation8 + $0x30] sm:$0xf]
        %v1908 = vld [vmem:[#allocation8 + $0x34] sm:$0xf]
        %v1909 = vld [vmem:[#allocation8 + $0x38] sm:$0xf]
        %v1910 = vld [vmem:[#allocation8 + $0x3c] sm:$0xf]
        %v1911 = vld [vmem:[#allocation8 + $0x40] sm:$0xf]
        %v1912 = vld [vmem:[#allocation8 + $0x44] sm:$0xf]
        %v1913 = vld [vmem:[#allocation8 + $0x48] sm:$0xf]
        %v1914 = vld [vmem:[#allocation8 + $0x4c] sm:$0xf]
        %v1915 = vld [vmem:[#allocation8 + $0x50] sm:$0xf]
        %v1916 = vld [vmem:[#allocation8 + $0x54] sm:$0xf]
        %v1917 = vld [vmem:[#allocation8 + $0x58] sm:$0xf]
        %v1918 = vld [vmem:[#allocation8 + $0x5c] sm:$0xf]
        %v1919 = vld [vmem:[#allocation8 + $0x60] sm:$0xf]
        %v1920 = vld [vmem:[#allocation8 + $0x64] sm:$0xf]
        %v1921 = vld [vmem:[#allocation8 + $0x68] sm:$0xf]
        %v1922 = vld [vmem:[#allocation8 + $0x6c] sm:$0xf]
        %v1923 = vld [vmem:[#allocation8 + $0x70] sm:$0xf]
        %v1924 = vld [vmem:[#allocation8 + $0x74] sm:$0xf]
        %v1925 = vld [vmem:[#allocation8 + $0x78] sm:$0xf]
        %v1926 = vld [vmem:[#allocation8 + $0x7c] sm:$0xf]
        %v1927 = vld [vmem:[%s4] sm:$0x1]
        %v1929 = vperm.slane %v1927, 0
        %v1963 = vunpack.c.l.b16 %v1895
        %v1964 = vunpack.c.l.b16 %v1896
        %v1965 = vunpack.c.l.b16 %v1897
        %v1966 = vunpack.c.l.b16 %v1898
        %v1967 = vunpack.c.l.b16 %v1899
        %v1968 = vunpack.c.l.b16 %v1900
        %v1969 = vunpack.c.l.b16 %v1901
        %v1970 = vunpack.c.l.b16 %v1902
        %v1971 = vunpack.c.l.b16 %v1903
        %v1972 = vunpack.c.l.b16 %v1904
        %v1973 = vunpack.c.l.b16 %v1905
        %v1974 = vunpack.c.l.b16 %v1906
        %v1975 = vunpack.c.l.b16 %v1907
        %v1976 = vunpack.c.l.b16 %v1908
        %v1977 = vunpack.c.l.b16 %v1909
        %v1978 = vunpack.c.l.b16 %v1910
        %v1979 = vunpack.c.l.b16 %v1911
        %v1980 = vunpack.c.l.b16 %v1912
        %v1981 = vunpack.c.l.b16 %v1913
        %v1982 = vunpack.c.l.b16 %v1914
        %v1983 = vunpack.c.l.b16 %v1915
        %v1984 = vunpack.c.l.b16 %v1916
        %v1985 = vunpack.c.l.b16 %v1917
        %v1986 = vunpack.c.l.b16 %v1918
        %v1987 = vunpack.c.l.b16 %v1919
        %v1988 = vunpack.c.l.b16 %v1920
        %v1989 = vunpack.c.l.b16 %v1921
        %v1990 = vunpack.c.l.b16 %v1922
        %v1991 = vunpack.c.l.b16 %v1923
        %v1992 = vunpack.c.l.b16 %v1924
        %v1993 = vunpack.c.l.b16 %v1925
        %v1994 = vunpack.c.l.b16 %v1926
        %v1995 = vpack.c.b16 %v1964, %v1963
        %v1996 = vpack.c.b16 %v1966, %v1965
        %v1997 = vpack.c.b16 %v1968, %v1967
        %v1998 = vpack.c.b16 %v1970, %v1969
        %v1999 = vpack.c.b16 %v1972, %v1971
        %v2000 = vpack.c.b16 %v1974, %v1973
        %v2001 = vpack.c.b16 %v1976, %v1975
        %v2002 = vpack.c.b16 %v1978, %v1977
        %v2003 = vpack.c.b16 %v1980, %v1979
        %v2004 = vpack.c.b16 %v1982, %v1981
        %v2005 = vpack.c.b16 %v1984, %v1983
        %v2006 = vpack.c.b16 %v1986, %v1985
        %v2007 = vpack.c.b16 %v1988, %v1987
        %v2008 = vpack.c.b16 %v1990, %v1989
        %v2009 = vpack.c.b16 %v1992, %v1991
        %v2010 = vpack.c.b16 %v1994, %v1993
        %2027 = vmatpush.bf16.msra.mxu0 %v2002
        %2028 = vmatpush.bf16.msra.mxu0 %v2001
        %2029 = vmatpush.bf16.msra.mxu0 %v2000
        %2030 = vmatpush.bf16.msra.mxu0 %v1999
        %2031 = vmatpush.bf16.msra.mxu0 %v1998
        %2032 = vmatpush.bf16.msra.mxu0 %v1997
        %2033 = vmatpush.bf16.msra.mxu0 %v1996
        %2034 = vmatpush.bf16.msra.mxu0 %v1995
        %2035 = vmatmul.bf16.gmra.mxu0 %v1879
        %v2036 = vpop.f32.mrf.mxu0
        %v2037 = vadd.f32 %v1929, %v2036
        %v2038 = vpop.f32.mrf.mxu0
        %v2039 = vadd.f32 %v1929, %v2038
        %2040 = vmatmul.bf16.gmra.mxu0 %v1881
        %v2041 = vpop.f32.mrf.mxu0
        %v2042 = vadd.f32 %v1929, %v2041
        %v2043 = vpop.f32.mrf.mxu0
        %v2044 = vadd.f32 %v1929, %v2043
        %2045 = vmatmul.bf16.gmra.mxu0 %v1883
        %v2046 = vpop.f32.mrf.mxu0
        %v2047 = vadd.f32 %v1929, %v2046
        %v2048 = vpop.f32.mrf.mxu0
        %v2049 = vadd.f32 %v1929, %v2048
        %2050 = vmatmul.bf16.gmra.mxu0 %v1885
        %v2051 = vpop.f32.mrf.mxu0
        %v2052 = vadd.f32 %v1929, %v2051
        %v2053 = vpop.f32.mrf.mxu0
        %v2054 = vadd.f32 %v1929, %v2053
        %2055 = vmatmul.bf16.gmra.mxu0 %v1887
        %v2056 = vpop.f32.mrf.mxu0
        %v2057 = vadd.f32 %v1929, %v2056
        %v2058 = vpop.f32.mrf.mxu0
        %v2059 = vadd.f32 %v1929, %v2058
        %2060 = vmatmul.bf16.gmra.mxu0 %v1889
        %v2061 = vpop.f32.mrf.mxu0
        %v2062 = vadd.f32 %v1929, %v2061
        %v2063 = vpop.f32.mrf.mxu0
        %v2064 = vadd.f32 %v1929, %v2063
        %2065 = vmatmul.bf16.gmra.mxu0 %v1891
        %v2066 = vpop.f32.mrf.mxu0
        %v2067 = vadd.f32 %v1929, %v2066
        %v2068 = vpop.f32.mrf.mxu0
        %v2069 = vadd.f32 %v1929, %v2068
        %2070 = vmatmul.bf16.gmra.mxu0 %v1893
        %v2071 = vpop.f32.mrf.mxu0
        %v2072 = vadd.f32 %v1929, %v2071
        %v2073 = vpop.f32.mrf.mxu0
        %v2074 = vadd.f32 %v1929, %v2073
        %2075 = vdwg.mxu0
        %2076 = vmatpush.bf16.msra.mxu0 %v2010
        %2077 = vmatpush.bf16.msra.mxu0 %v2009
        %2078 = vmatpush.bf16.msra.mxu0 %v2008
        %2079 = vmatpush.bf16.msra.mxu0 %v2007
        %2080 = vmatpush.bf16.msra.mxu0 %v2006
        %2081 = vmatpush.bf16.msra.mxu0 %v2005
        %2082 = vmatpush.bf16.msra.mxu0 %v2004
        %2083 = vmatpush.bf16.msra.mxu0 %v2003
        %2084 = vmatmul.bf16.gmra.mxu0 %v1880
        %v2085 = vpop.f32.mrf.mxu0
        %v2086 = vadd.f32 %v2037, %v2085
        %v2087 = vpop.f32.mrf.mxu0
        %v2088 = vadd.f32 %v2039, %v2087
        %2089 = vmatmul.bf16.gmra.mxu0 %v1882
        %v2090 = vpop.f32.mrf.mxu0
        %v2091 = vadd.f32 %v2042, %v2090
        %v2092 = vpop.f32.mrf.mxu0
        %v2093 = vadd.f32 %v2044, %v2092
        %2094 = vmatmul.bf16.gmra.mxu0 %v1884
        %v2095 = vpop.f32.mrf.mxu0
        %v2096 = vadd.f32 %v2047, %v2095
        %v2097 = vpop.f32.mrf.mxu0
        %v2098 = vadd.f32 %v2049, %v2097
        %2099 = vmatmul.bf16.gmra.mxu0 %v1886
        %v2100 = vpop.f32.mrf.mxu0
        %v2101 = vadd.f32 %v2052, %v2100
        %v2102 = vpop.f32.mrf.mxu0
        %v2103 = vadd.f32 %v2054, %v2102
        %2104 = vmatmul.bf16.gmra.mxu0 %v1888
        %v2105 = vpop.f32.mrf.mxu0
        %v2106 = vadd.f32 %v2057, %v2105
        %v2107 = vpop.f32.mrf.mxu0
        %v2108 = vadd.f32 %v2059, %v2107
        %2109 = vmatmul.bf16.gmra.mxu0 %v1890
        %v2110 = vpop.f32.mrf.mxu0
        %v2111 = vadd.f32 %v2062, %v2110
        %v2112 = vpop.f32.mrf.mxu0
        %v2113 = vadd.f32 %v2064, %v2112
        %2114 = vmatmul.bf16.gmra.mxu0 %v1892
        %v2115 = vpop.f32.mrf.mxu0
        %v2116 = vadd.f32 %v2067, %v2115
        %v2117 = vpop.f32.mrf.mxu0
        %v2118 = vadd.f32 %v2069, %v2117
        %2119 = vmatmul.bf16.gmra.mxu0 %v1894
        %v2120 = vpop.f32.mrf.mxu0
        %v2121 = vadd.f32 %v2072, %v2120
        %v2122 = vpop.f32.mrf.mxu0
        %v2123 = vadd.f32 %v2074, %v2122
        %2124 = vdwg.mxu0
        %v2125 = vmax.f32 %v2086, 0.0
        %v2126 = vmax.f32 %v2088, 0.0
        %v2127 = vmax.f32 %v2091, 0.0
        %v2128 = vmax.f32 %v2093, 0.0
        %v2129 = vmax.f32 %v2096, 0.0
        %v2130 = vmax.f32 %v2098, 0.0
        %v2131 = vmax.f32 %v2101, 0.0
        %v2132 = vmax.f32 %v2103, 0.0
        %v2133 = vmax.f32 %v2106, 0.0
        %v2134 = vmax.f32 %v2108, 0.0
        %v2135 = vmax.f32 %v2111, 0.0
        %v2136 = vmax.f32 %v2113, 0.0
        %v2137 = vmax.f32 %v2116, 0.0
        %v2138 = vmax.f32 %v2118, 0.0
        %v2139 = vmax.f32 %v2121, 0.0
        %v2140 = vmax.f32 %v2123, 0.0
        %v2141 = vpack.c.bf16 %v2126, %v2125
        %v2142 = vpack.c.bf16 %v2128, %v2127
        %v2143 = vpack.c.bf16 %v2130, %v2129
        %v2144 = vpack.c.bf16 %v2132, %v2131
        %v2145 = vpack.c.bf16 %v2134, %v2133
        %v2146 = vpack.c.bf16 %v2136, %v2135
        %v2147 = vpack.c.bf16 %v2138, %v2137
        %v2148 = vpack.c.bf16 %v2140, %v2139
        %v2149 = vld [vmem:[%s5] sm:$0xf]
        %v2150 = vld [vmem:[%s5 + $0x4] sm:$0xf]
        %v2151 = vld [vmem:[%s5 + $0x8] sm:$0xf]
        %v2152 = vld [vmem:[%s5 + $0xc] sm:$0xf]
        %v2153 = vld [vmem:[%s5 + $0x10] sm:$0xf]
        %v2154 = vld [vmem:[%s5 + $0x14] sm:$0xf]
        %v2155 = vld [vmem:[%s5 + $0x18] sm:$0xf]
        %v2156 = vld [vmem:[%s5 + $0x1c] sm:$0xf]
        %v2157 = vld [vmem:[%s5 + $0x20] sm:$0xf]
        %v2158 = vld [vmem:[%s5 + $0x24] sm:$0xf]
        %v2159 = vld [vmem:[%s5 + $0x28] sm:$0xf]
        %v2160 = vld [vmem:[%s5 + $0x2c] sm:$0xf]
        %v2161 = vld [vmem:[%s5 + $0x30] sm:$0xf]
        %v2162 = vld [vmem:[%s5 + $0x34] sm:$0xf]
        %v2163 = vld [vmem:[%s5 + $0x38] sm:$0xf]
        %v2164 = vld [vmem:[%s5 + $0x3c] sm:$0xf]
        %v2165 = vld [vmem:[%s6] sm:$0x1]
        %v2167 = vperm.slane %v2165, 0
        %v2185 = vunpack.c.l.b16 %v2149
        %v2186 = vunpack.c.l.b16 %v2150
        %v2187 = vunpack.c.l.b16 %v2151
        %v2188 = vunpack.c.l.b16 %v2152
        %v2189 = vunpack.c.l.b16 %v2153
        %v2190 = vunpack.c.l.b16 %v2154
        %v2191 = vunpack.c.l.b16 %v2155
        %v2192 = vunpack.c.l.b16 %v2156
        %v2193 = vunpack.c.l.b16 %v2157
        %v2194 = vunpack.c.l.b16 %v2158
        %v2195 = vunpack.c.l.b16 %v2159
        %v2196 = vunpack.c.l.b16 %v2160
        %v2197 = vunpack.c.l.b16 %v2161
        %v2198 = vunpack.c.l.b16 %v2162
        %v2199 = vunpack.c.l.b16 %v2163
        %v2200 = vunpack.c.l.b16 %v2164
        %v2201 = vpack.c.b16 %v2186, %v2185
        %v2202 = vpack.c.b16 %v2188, %v2187
        %v2203 = vpack.c.b16 %v2190, %v2189
        %v2204 = vpack.c.b16 %v2192, %v2191
        %v2205 = vpack.c.b16 %v2194, %v2193
        %v2206 = vpack.c.b16 %v2196, %v2195
        %v2207 = vpack.c.b16 %v2198, %v2197
        %v2208 = vpack.c.b16 %v2200, %v2199
        %2217 = vmatpush.bf16.msra.mxu0 %v2208
        %2218 = vmatpush.bf16.msra.mxu0 %v2207
        %2219 = vmatpush.bf16.msra.mxu0 %v2206
        %2220 = vmatpush.bf16.msra.mxu0 %v2205
        %2221 = vmatpush.bf16.msra.mxu0 %v2204
        %2222 = vmatpush.bf16.msra.mxu0 %v2203
        %2223 = vmatpush.bf16.msra.mxu0 %v2202
        %2224 = vmatpush.bf16.msra.mxu0 %v2201
        %2225 = vmatmul.bf16.gmra.mxu0 %v2141
        %v2226 = vpop.f32.mrf.mxu0
        %v2227 = vadd.f32 %v2167, %v2226
        %v2228 = vpop.f32.mrf.mxu0
        %v2229 = vadd.f32 %v2167, %v2228
        %2230 = vmatmul.bf16.gmra.mxu0 %v2142
        %v2231 = vpop.f32.mrf.mxu0
        %v2232 = vadd.f32 %v2167, %v2231
        %v2233 = vpop.f32.mrf.mxu0
        %v2234 = vadd.f32 %v2167, %v2233
        %2235 = vmatmul.bf16.gmra.mxu0 %v2143
        %v2236 = vpop.f32.mrf.mxu0
        %v2237 = vadd.f32 %v2167, %v2236
        %v2238 = vpop.f32.mrf.mxu0
        %v2239 = vadd.f32 %v2167, %v2238
        %2240 = vmatmul.bf16.gmra.mxu0 %v2144
        %v2241 = vpop.f32.mrf.mxu0
        %v2242 = vadd.f32 %v2167, %v2241
        %v2243 = vpop.f32.mrf.mxu0
        %v2244 = vadd.f32 %v2167, %v2243
        %2245 = vmatmul.bf16.gmra.mxu0 %v2145
        %v2246 = vpop.f32.mrf.mxu0
        %v2247 = vadd.f32 %v2167, %v2246
        %v2248 = vpop.f32.mrf.mxu0
        %v2249 = vadd.f32 %v2167, %v2248
        %2250 = vmatmul.bf16.gmra.mxu0 %v2146
        %v2251 = vpop.f32.mrf.mxu0
        %v2252 = vadd.f32 %v2167, %v2251
        %v2253 = vpop.f32.mrf.mxu0
        %v2254 = vadd.f32 %v2167, %v2253
        %2255 = vmatmul.bf16.gmra.mxu0 %v2147
        %v2256 = vpop.f32.mrf.mxu0
        %v2257 = vadd.f32 %v2167, %v2256
        %v2258 = vpop.f32.mrf.mxu0
        %v2259 = vadd.f32 %v2167, %v2258
        %2260 = vmatmul.bf16.gmra.mxu0 %v2148
        %v2261 = vpop.f32.mrf.mxu0
        %v2262 = vadd.f32 %v2167, %v2261
        %v2263 = vpop.f32.mrf.mxu0
        %v2264 = vadd.f32 %v2167, %v2263
        %2265 = vdwg.mxu0
        %v2266 = vmax.f32 %v2227, 0.0
        %v2267 = vmax.f32 %v2229, 0.0
        %v2268 = vmax.f32 %v2232, 0.0
        %v2269 = vmax.f32 %v2234, 0.0
        %v2270 = vmax.f32 %v2237, 0.0
        %v2271 = vmax.f32 %v2239, 0.0
        %v2272 = vmax.f32 %v2242, 0.0
        %v2273 = vmax.f32 %v2244, 0.0
        %v2274 = vmax.f32 %v2247, 0.0
        %v2275 = vmax.f32 %v2249, 0.0
        %v2276 = vmax.f32 %v2252, 0.0
        %v2277 = vmax.f32 %v2254, 0.0
        %v2278 = vmax.f32 %v2257, 0.0
        %v2279 = vmax.f32 %v2259, 0.0
        %v2280 = vmax.f32 %v2262, 0.0
        %v2281 = vmax.f32 %v2264, 0.0
        %v2282 = vld [vmem:[%s7] sm:$0x1]
        %v2283 = vpack.c.bf16 %v2267, %v2266
        %v2284 = vpack.c.bf16 %v2269, %v2268
        %v2285 = vpack.c.bf16 %v2271, %v2270
        %v2286 = vpack.c.bf16 %v2273, %v2272
        %v2287 = vpack.c.bf16 %v2275, %v2274
        %v2288 = vpack.c.bf16 %v2277, %v2276
        %v2289 = vpack.c.bf16 %v2279, %v2278
        %v2290 = vpack.c.bf16 %v2281, %v2280
        %v2291 = vld [vmem:[#allocation2] sm:$0x1]
        %2293 = vset.pattern.permute.xlu0 0
        %2294 = vperm.xlu0 %2293, %v2291
        %v2295 = vpop.permute.xlu0 %2294
        %v2297 = vperm.slane %v2295, 0
        %vm2298 = vcmask 523264
        %v2300 = vsel %vm2298, %v2282, 0
        %v2303 = vsel %vm2298, %v2283, 0
        %v2306 = vsel %vm2298, %v2284, 0
        %v2309 = vsel %vm2298, %v2285, 0
        %v2312 = vsel %vm2298, %v2286, 0
        %v2315 = vsel %vm2298, %v2287, 0
        %v2318 = vsel %vm2298, %v2288, 0
        %v2321 = vsel %vm2298, %v2289, 0
        %v2324 = vsel %vm2298, %v2290, 0
        %2326 = vmatpush.bf16.xpose.msra.mxu0 %v2324
        %2327 = vmatpush.bf16.xpose.msra.mxu0 %v2321
        %2328 = vmatpush.bf16.xpose.msra.mxu0 %v2318
        %2329 = vmatpush.bf16.xpose.msra.mxu0 %v2315
        %2330 = vmatpush.bf16.xpose.msra.mxu0 %v2312
        %2331 = vmatpush.bf16.xpose.msra.mxu0 %v2309
        %2332 = vmatpush.bf16.xpose.msra.mxu0 %v2306
        %2333 = vmatpush.bf16.xpose.msra.mxu0 %v2303
        %2334 = vmatmul.bf16.gmra.mxu0 %v2300
        %v2335 = vpop.f32.mrf.mxu0
        %v2336 = vadd.f32 %v2297, %v2335
        %v2337 = vpop.f32.mrf.mxu0
        %2338 = vdwg.mxu0
        %v2339 = vtanh.pop %v2336
        %2340 = vst [vmem:[%s387] sm:$0x1] %v2339
        %s2341 = sand.u32 %s231, 1
        %s2342 = scalar_lea.sflag [#allocation5], %s2341
        %s2343 = sand.u32 %s231, 1
        %s2344 = scalar_lea.vmem [#allocation9], %s2343
        // Predicated region
        $region69: #{tpu_custom_call.1} parent=55 // pred_check
          %p2345 = pneg %p241
        $region70: #{tpu_custom_call.1} parent=55 // pred_check_branch
          %2347 = sbr.rel (%p2345) target = $region72
        $region71: #{tpu_custom_call.1} parent=55 // pred_region
          %2349 = vsyncadd %s2342, 0
          %s2350 = scalar_lea.hbm %s9, %s29
          %s2352 = sshll.u32 %s2344, 4
          %s2353 = int_to_ptr.vmem [resolvable:$true] %s2352
          %s2354 = sshll.u32 %s2350, 4
          %s2355 = int_to_ptr.hbm [resolvable:$true] %s2354
          %2357 = dma.vmem_to_hbm [thread:$0]  %s2353, 16, %s2355, %s2342
        $region72: #{tpu_custom_call.1} parent=55 // pred_fallthru
          _
      $region56: #{tpu_custom_call.1} parent=5 // pred_fallthru
        _
      %p2358 = scmp.le.s32.totalorder 2, %s24
      // Predicated region
      $region73: #{tpu_custom_call.1} parent=5 // pred_check
        %p2359 = pneg %p2358
      $region74: #{tpu_custom_call.1} parent=5 // pred_check_branch
        %2361 = sbr.rel (%p2359) target = $region76
      $region75: #{tpu_custom_call.1} parent=5 // pred_region
        %s2362 = ssub.s32 %s24, 2
        // Predicated region
        $region77: #{tpu_custom_call.1} parent=75 // pred_check
          %p2363 = pneg %p247
        $region78: #{tpu_custom_call.1} parent=75 // pred_check_branch
          %2365 = sbr.rel (%p2363) target = $region80
        $region79: #{tpu_custom_call.1} parent=75 // pred_region
          %s2366 = sand.u32 %s232, 1
          %s2367 = scalar_lea.sflag [#allocation5], %s2366
          %s2368 = sand.u32 %s232, 1
          %s2369 = scalar_lea.vmem [#allocation9], %s2368
          %2371 = dma.done %s2367, 16
        $region80: #{tpu_custom_call.1} parent=75 // pred_fallthru
          _
      $region76: #{tpu_custom_call.1} parent=5 // pred_fallthru
        _
    $region6: #{tpu_custom_call.1} parent=1 // loop_footer
      %s28 = sadd.s32 1, %s24
    $region7: #{tpu_custom_call.1} parent=1 // loop_footer_branch
      %23 = sbr.rel target = $region3
    $region8: #{tpu_custom_call.1} parent=1 // loop_exit
      _
    %2372 = vsyncpa [#allocation4], 1
    %s2373 = scalar_lea.sflag [#allocation4], 1
    %2374 = vsyncpa %s2373, 1
    %2375 = vsyncpa [#allocation7], 1
    %2376 = vsyncpa [#allocation5], 1
    %s2377 = scalar_lea.sflag [#allocation5], 1
    %2378 = vsyncpa %s2377, 1

</llo_original>
